<compile_context>
chip_gen: v7x
topology: tpu7x:2x2x1
jax: 0.10.0
libtpu: 0.0.40
codegen_flags: <defaults>
</compile_context>

<pallas_src>
import jax
import jax.numpy as jnp
from jax.experimental import pallas as pl
from jax.experimental.pallas import tpu as pltpu


# ----------------------------------------------------------------------------
# Fused Pallas kernel (one sample per grid step: data_bn + gcn1 + gcn2 + head)
# ----------------------------------------------------------------------------
def _full_spec(arr):
    """Whole-array block, constant across the grid (loaded once, stays resident)."""
    return pl.BlockSpec(arr.shape, lambda n, _nd=arr.ndim: (0,) * _nd)


def _sagcn_kernel(x_ref, bns_ref, abig1_ref, abig2_ref,
                  wc1_ref, bc1_ref, w11_ref, b11_ref, w12_ref, b12_ref,
                  wcr2_ref, bcr2_ref, w21_ref, b21_ref, w22_ref, b22_ref,
                  pool_ref, wa1_ref, ba1_ref, wa2_ref, ba2_ref,
                  wf_ref, bf_ref, o_ref):
    """Full SAGCN forward for one (n, m) sample.

    x_ref:        (T*V, C_in)   raw input rows (row = t*V + v, channels-last)
    bns:          (T*V, C_in)   folded data_bn scale (eval mode); shift is folded
                                into bc1 host-side
    abig1/abig2:  (T*V, T*V)    I_T kron (A*importance)^T  graph mixing (bf16)
    wc1 (bf16) / bc1 (TV,32 f32, includes data_bn shift); w11/b11, w12/b12: MLP-1
    wcr2 (bf16) / bcr2: layer-2 [gcn conv | residual conv (BN folded)] packed (32,128)
    w21/b21, w22/b22: layer-2 MLP
    pool:         (V, T*V)      temporal average pooling matrix (1/T on diagonal blocks)
    wa1/ba1, wa2/ba2: spatial attention;  wf/bf: fcn padded to 128 lanes
    o_ref:        (1, 128)      lane-dense padded logits
    """
    f32 = jnp.float32
    bf16 = jnp.bfloat16

    def mm(a, w_ref):  # bf16 operands (weights pre-cast host-side), f32 MXU accumulation
        return jnp.dot(a.astype(bf16), w_ref[...], preferred_element_type=f32)

    # ---- data_bn (eval mode) scale; shift is pre-folded into bc1 ------------
    x0 = x_ref[...] * bns_ref[...]                                    # (TV, Cin) f32

    # ---- s_gcn layer 1: Cin -> 32, residual = 0 ------------------------------
    y1 = mm(x0, wc1_ref) + bc1_ref[...]                               # (TV, 32)
    z1 = jnp.dot(abig1_ref[...], y1.astype(bf16),
                 preferred_element_type=f32)                          # graph mixing
    h1 = mm(z1, w11_ref) + b11_ref[...]                               # (TV, Cin)
    h1 = jnp.where(h1 > 0, h1, 0.01 * h1)                             # LeakyReLU
    m1 = mm(h1, w12_ref) + b12_ref[...]                               # (TV, 32)
    m1 = jnp.where(m1 > 0, m1, 0.01 * m1)
    x1 = jnp.maximum(m1, 0.0)                                         # ReLU

    # ---- s_gcn layer 2: 32 -> 64, residual conv + BN (folded, packed) --------
    c2 = w22_ref.shape[1]                                             # = 64
    yz = mm(x1, wcr2_ref) + bcr2_ref[...]                             # (TV, 128)
    y2 = yz[:, :c2]                                                   # gcn branch
    r2 = yz[:, c2:]                                                   # residual branch
    z2 = jnp.dot(abig2_ref[...], y2.astype(bf16),
                 preferred_element_type=f32)                          # (TV, 64)
    h2 = mm(z2, w21_ref) + b21_ref[...]                               # (TV, 32)
    h2 = jnp.where(h2 > 0, h2, 0.01 * h2)
    m2 = mm(h2, w22_ref) + b22_ref[...]                               # (TV, 64)
    m2 = jnp.where(m2 > 0, m2, 0.01 * m2)
    x2 = jnp.maximum(m2 + r2, 0.0)                                    # ReLU

    # ---- head: avg-pool over T (as matmul), attention, softmax, fcn (f32) ----
    pooled = jnp.dot(pool_ref[...], x2, preferred_element_type=f32)   # (V, 64)
    e = jnp.tanh(jnp.dot(pooled, wa1_ref[...],
                         preferred_element_type=f32) + ba1_ref[...])
    e = jnp.dot(e, wa2_ref[...], preferred_element_type=f32) + ba2_ref[...]  # (V, 1)
    e = e - jnp.max(e, axis=0, keepdims=True)
    w = jnp.exp(e)
    beta = w / jnp.sum(w, axis=0, keepdims=True)                      # softmax over V
    ctx = jnp.sum(beta * pooled, axis=0, keepdims=True)               # (1, 64)
    o_ref[...] = jnp.dot(ctx, wf_ref[...],
                         preferred_element_type=f32) + bf_ref[...]    # (1, 128)


# ----------------------------------------------------------------------------
# Forward wrapper (only layout conversion + tiny parameter folding outside)
# ----------------------------------------------------------------------------
def sagcn_forward(x, p, A):
    N, C, T, V, M = x.shape
    NM, TV = N * M, T * V
    bf16 = jnp.bfloat16

    # input layout: (N, C, T, V, M) -> (N*M, T*V, C), row = t*V + v
    x2 = jnp.transpose(x, (0, 4, 2, 3, 1)).reshape(NM, TV, C)

    # data_bn (BatchNorm1d over V*C, eval mode) as a (T*V, C) scale table;
    # the shift is folded through layer-1's 1x1 conv into its bias below.
    bn_s = jnp.tile(p['bn_scale'].reshape(V, C), (T, 1))
    bn_b = jnp.tile(p['bn_shift'].reshape(V, C), (T, 1))

    # block-diagonal graph-mixing matrices (I_T kron (A*importance)^T), pre-cast bf16
    eyeT = jnp.eye(T, dtype=jnp.float32)
    abig1 = jnp.kron(eyeT, (A[0] * p['imp1'][0]).T).astype(bf16)
    abig2 = jnp.kron(eyeT, (A[0] * p['imp2'][0]).T).astype(bf16)

    # layer-1: fold the data_bn shift into the conv bias (kept in f32)
    bc1_full = bn_b @ p['l1_wc'] + p['l1_bc']                         # (TV, 32)

    # layer-2: fold residual BatchNorm into the residual conv, pack with gcn conv
    wr_f = p['l2_wr'] * p['l2_bn_scale']
    br_f = p['l2_br'] * p['l2_bn_scale'] + p['l2_bn_shift']
    wcr2 = jnp.concatenate([p['l2_wc'], wr_f], axis=1).astype(bf16)   # (32, 128)
    bcr2 = jnp.concatenate([p['l2_bc'], br_f], axis=1)                # (1, 128)

    # temporal average pooling as a matmul: pooled[v] = mean_t rows[t*V + v]
    pool = jnp.tile(jnp.eye(V, dtype=jnp.float32), (1, T)) / T        # (V, T*V)

    # fcn padded to a lane-dense 128-wide output slab
    nc = p['wf'].shape[1]
    ncp = 128 * pl.cdiv(nc, 128)
    wf_pad = jnp.pad(p['wf'], ((0, 0), (0, ncp - nc)))
    bf_pad = jnp.pad(p['bf'], ((0, 0), (0, ncp - nc)))

    args = [x2, bn_s, abig1, abig2,
            p['l1_wc'].astype(bf16), bc1_full,
            p['l1_w1'].astype(bf16), p['l1_b1'],
            p['l1_w2'].astype(bf16), p['l1_b2'],
            wcr2, bcr2,
            p['l2_w1'].astype(bf16), p['l2_b1'],
            p['l2_w2'].astype(bf16), p['l2_b2'],
            pool, p['wa1'], p['ba1'], p['wa2'], p['ba2'], wf_pad, bf_pad]

    in_specs = [pl.BlockSpec((None, TV, C), lambda n: (n, 0, 0))]
    in_specs += [_full_spec(a) for a in args[1:]]

    out = pl.pallas_call(
        _sagcn_kernel,
        out_shape=jax.ShapeDtypeStruct((NM, 1, ncp), jnp.float32),
        grid=(NM,),
        in_specs=in_specs,
        out_specs=pl.BlockSpec((None, 1, ncp), lambda n: (n, 0, 0)),
        compiler_params=pltpu.CompilerParams(dimension_semantics=("parallel",)),
    )(*args)

    # reference's x.view(N, c, t, v) requires M == 1, so NM == N here
    return out.reshape(NM, ncp)[:, :nc].reshape(N, nc)


# ----------------------------------------------------------------------------
# Deterministic parameter init + pure-JAX reference for verification
# ----------------------------------------------------------------------------
def init_params(key, C_in, V, num_class, eps=1e-5):
    ks = jax.random.split(key, 40)
    w = lambda k, shape, s=0.1: s * jax.random.normal(k, shape, jnp.float32)
    p = {}

    # data_bn (eval mode): fold into scale/shift
    VC = V * C_in
    g = 1.0 + 0.1 * jax.random.normal(ks[0], (VC,), jnp.float32)
    b = 0.1 * jax.random.normal(ks[1], (VC,), jnp.float32)
    mu = 0.1 * jax.random.normal(ks[2], (VC,), jnp.float32)
    var = 1.0 + 0.1 * jnp.abs(jax.random.normal(ks[3], (VC,), jnp.float32))
    p['bn_scale'] = g / jnp.sqrt(var + eps)
    p['bn_shift'] = b - mu * p['bn_scale']

    # layer 1: s_gcn(C_in, 32), no residual
    p['l1_wc'] = w(ks[4], (C_in, 32));  p['l1_bc'] = w(ks[5], (1, 32), 0.05)
    p['l1_w1'] = w(ks[6], (32, C_in));  p['l1_b1'] = w(ks[7], (1, C_in), 0.05)
    p['l1_w2'] = w(ks[8], (C_in, 32));  p['l1_b2'] = w(ks[9], (1, 32), 0.05)

    # layer 2: s_gcn(32, 64) with residual conv + BN2d(64)
    p['l2_wc'] = w(ks[10], (32, 64));   p['l2_bc'] = w(ks[11], (1, 64), 0.05)
    p['l2_w1'] = w(ks[12], (64, 32));   p['l2_b1'] = w(ks[13], (1, 32), 0.05)
    p['l2_w2'] = w(ks[14], (32, 64));   p['l2_b2'] = w(ks[15], (1, 64), 0.05)
    p['l2_wr'] = w(ks[16], (32, 64));   p['l2_br'] = w(ks[17], (1, 64), 0.05)
    rg = 1.0 + 0.1 * jax.random.normal(ks[18], (1, 64), jnp.float32)
    rb = 0.1 * jax.random.normal(ks[19], (1, 64), jnp.float32)
    rmu = 0.1 * jax.random.normal(ks[20], (1, 64), jnp.float32)
    rvar = 1.0 + 0.1 * jnp.abs(jax.random.normal(ks[21], (1, 64), jnp.float32))
    p['l2_bn_scale'] = rg / jnp.sqrt(rvar + eps)
    p['l2_bn_shift'] = rb - rmu * p['l2_bn_scale']

    # spatial attention (64 -> 64 -> 1) and fcn (Conv2d(64, num_class, 1))
    p['wa1'] = w(ks[22], (64, 64));     p['ba1'] = w(ks[23], (1, 64), 0.05)
    p['wa2'] = w(ks[24], (64, 1));      p['ba2'] = w(ks[25], (1, 1), 0.05)
    p['wf'] = w(ks[26], (64, num_class)); p['bf'] = w(ks[27], (1, num_class), 0.05)

    # learnable edge importance (PyTorch init: ones)
    p['imp1'] = jnp.ones((1, V, V), jnp.float32)
    p['imp2'] = jnp.ones((1, V, V), jnp.float32)
    return p


def build_adjacency(V):
    i = jnp.arange(V)
    ring = (jnp.mod(i[:, None] - i[None, :], V) == 1) | \
           (jnp.mod(i[None, :] - i[:, None], V) == 1)
    adj = jnp.eye(V, dtype=jnp.float32) + ring.astype(jnp.float32)
    adj = adj / jnp.sum(adj, axis=1, keepdims=True)
    return adj[None]                                                  # (1, V, V)


def reference_forward(x, p, A):
    """Plain-JAX f32 reference mirroring the (repaired) PyTorch semantics."""
    N, C, T, V, M = x.shape
    xp = jnp.transpose(x, (0, 4, 3, 1, 2)).reshape(N * M, V * C, T)
    xbn = xp * p['bn_scale'][None, :, None] + p['bn_shift'][None, :, None]
    h = jnp.transpose(xbn.reshape(N, M, V, C, T), (0, 1, 4, 2, 3))
    h = h.reshape(N * M, T, V, C)

    def layer(h, A0, wc, bc, w1, b1, w2, b2, res=None):
        y = h @ wc + bc
        z = jnp.einsum('ntvc,vw->ntwc', y, A0)
        u = z @ w1 + b1
        u = jnp.where(u > 0, u, 0.01 * u)
        m = u @ w2 + b2
        m = jnp.where(m > 0, m, 0.01 * m)
        if res is not None:
            wr, br, rs, rt = res
            m = m + ((h @ wr + br) * rs + rt)
        return jnp.maximum(m, 0.0)

    h = layer(h, A[0] * p['imp1'][0], p['l1_wc'], p['l1_bc'],
              p['l1_w1'], p['l1_b1'], p['l1_w2'], p['l1_b2'])
    h = layer(h, A[0] * p['imp2'][0], p['l2_wc'], p['l2_bc'],
              p['l2_w1'], p['l2_b1'], p['l2_w2'], p['l2_b2'],
              res=(p['l2_wr'], p['l2_br'], p['l2_bn_scale'], p['l2_bn_shift']))
    h = h.reshape(N, T, V, 64)
    pooled = jnp.mean(h, axis=1)
    e = jnp.tanh(pooled @ p['wa1'] + p['ba1']) @ p['wa2'] + p['ba2']
    beta = jax.nn.softmax(e, axis=1)
    ctx = jnp.sum(beta * pooled, axis=1)
    return ctx @ p['wf'] + p['bf']


if __name__ == "__main__":
    N, C_in, T, V, M = 2, 4, 16, 8, 1
    num_class = 5

    key = jax.random.PRNGKey(0)
    kx, kp = jax.random.split(key)
    x = jax.random.normal(kx, (N, C_in, T, V, M), jnp.float32)
    params = init_params(kp, C_in, V, num_class)
    A = build_adjacency(V)

    fwd = jax.jit(sagcn_forward)
    logits = jax.block_until_ready(fwd(x, params, A))
    assert logits.shape == (N, num_class)

    ref = reference_forward(x, params, A)
    max_diff = float(jnp.max(jnp.abs(logits - ref)))
    if max_diff > 1e-2:
        raise RuntimeError(f"Pallas result mismatch vs reference: {max_diff}")

    print("KERNEL_OK")
</pallas_src>

<mosaic_0001>
module attributes {stable_mosaic.version = 11 : i64} {
  func.func @_sagcn_kernel(%arg0: i32, %arg1: memref<1x128x4xf32, #tpu.memory_space<vmem>>, %arg2: memref<128x4xf32, #tpu.memory_space<vmem>>, %arg3: memref<128x128xbf16, #tpu.memory_space<vmem>>, %arg4: memref<128x128xbf16, #tpu.memory_space<vmem>>, %arg5: memref<4x32xbf16, #tpu.memory_space<vmem>>, %arg6: memref<128x32xf32, #tpu.memory_space<vmem>>, %arg7: memref<32x4xbf16, #tpu.memory_space<vmem>>, %arg8: memref<1x4xf32, #tpu.memory_space<vmem>>, %arg9: memref<4x32xbf16, #tpu.memory_space<vmem>>, %arg10: memref<1x32xf32, #tpu.memory_space<vmem>>, %arg11: memref<32x128xbf16, #tpu.memory_space<vmem>>, %arg12: memref<1x128xf32, #tpu.memory_space<vmem>>, %arg13: memref<64x32xbf16, #tpu.memory_space<vmem>>, %arg14: memref<1x32xf32, #tpu.memory_space<vmem>>, %arg15: memref<32x64xbf16, #tpu.memory_space<vmem>>, %arg16: memref<1x64xf32, #tpu.memory_space<vmem>>, %arg17: memref<8x128xf32, #tpu.memory_space<vmem>>, %arg18: memref<64x64xf32, #tpu.memory_space<vmem>>, %arg19: memref<1x64xf32, #tpu.memory_space<vmem>>, %arg20: memref<64x1xf32, #tpu.memory_space<vmem>>, %arg21: memref<1x1xf32, #tpu.memory_space<vmem>>, %arg22: memref<64x128xf32, #tpu.memory_space<vmem>>, %arg23: memref<1x128xf32, #tpu.memory_space<vmem>>, %arg24: memref<1x1x128xf32, #tpu.memory_space<vmem>>) attributes {dimension_semantics = [#tpu.dimension_semantics<parallel>], iteration_bounds = array<i64: 2>, scalar_prefetch = 0 : i64, scratch_operands = 0 : i64, tpu.core_type = #tpu.core_type<tc>, window_params = [{transform_indices = @transform_0, window_bounds = array<i64: 1, 128, 4>}, {pipeline_mode = #tpu.pipeline_mode<synchronous>, transform_indices = @transform_1, window_bounds = array<i64: 128, 4>}, {pipeline_mode = #tpu.pipeline_mode<synchronous>, transform_indices = @transform_2, window_bounds = array<i64: 128, 128>}, {pipeline_mode = #tpu.pipeline_mode<synchronous>, transform_indices = @transform_3, window_bounds = array<i64: 128, 128>}, {pipeline_mode = #tpu.pipeline_mode<synchronous>, transform_indices = @transform_4, window_bounds = array<i64: 4, 32>}, {pipeline_mode = #tpu.pipeline_mode<synchronous>, transform_indices = @transform_5, window_bounds = array<i64: 128, 32>}, {pipeline_mode = #tpu.pipeline_mode<synchronous>, transform_indices = @transform_6, window_bounds = array<i64: 32, 4>}, {pipeline_mode = #tpu.pipeline_mode<synchronous>, transform_indices = @transform_7, window_bounds = array<i64: 1, 4>}, {pipeline_mode = #tpu.pipeline_mode<synchronous>, transform_indices = @transform_8, window_bounds = array<i64: 4, 32>}, {pipeline_mode = #tpu.pipeline_mode<synchronous>, transform_indices = @transform_9, window_bounds = array<i64: 1, 32>}, {pipeline_mode = #tpu.pipeline_mode<synchronous>, transform_indices = @transform_10, window_bounds = array<i64: 32, 128>}, {pipeline_mode = #tpu.pipeline_mode<synchronous>, transform_indices = @transform_11, window_bounds = array<i64: 1, 128>}, {pipeline_mode = #tpu.pipeline_mode<synchronous>, transform_indices = @transform_12, window_bounds = array<i64: 64, 32>}, {pipeline_mode = #tpu.pipeline_mode<synchronous>, transform_indices = @transform_13, window_bounds = array<i64: 1, 32>}, {pipeline_mode = #tpu.pipeline_mode<synchronous>, transform_indices = @transform_14, window_bounds = array<i64: 32, 64>}, {pipeline_mode = #tpu.pipeline_mode<synchronous>, transform_indices = @transform_15, window_bounds = array<i64: 1, 64>}, {pipeline_mode = #tpu.pipeline_mode<synchronous>, transform_indices = @transform_16, window_bounds = array<i64: 8, 128>}, {pipeline_mode = #tpu.pipeline_mode<synchronous>, transform_indices = @transform_17, window_bounds = array<i64: 64, 64>}, {pipeline_mode = #tpu.pipeline_mode<synchronous>, transform_indices = @transform_18, window_bounds = array<i64: 1, 64>}, {pipeline_mode = #tpu.pipeline_mode<synchronous>, transform_indices = @transform_19, window_bounds = array<i64: 64, 1>}, {pipeline_mode = #tpu.pipeline_mode<synchronous>, transform_indices = @transform_20, window_bounds = array<i64: 1, 1>}, {pipeline_mode = #tpu.pipeline_mode<synchronous>, transform_indices = @transform_21, window_bounds = array<i64: 64, 128>}, {pipeline_mode = #tpu.pipeline_mode<synchronous>, transform_indices = @transform_22, window_bounds = array<i64: 1, 128>}, {transform_indices = @transform_23, window_bounds = array<i64: 1, 1, 128>}]} {
    %c0 = arith.constant 0 : index
    %c0_0 = arith.constant 0 : index
    %c0_1 = arith.constant 0 : index
    %0 = vector.load %arg1[%c0, %c0_0, %c0_1] : memref<1x128x4xf32, #tpu.memory_space<vmem>>, vector<1x128x4xf32>
    %1 = vector.shape_cast %0 : vector<1x128x4xf32> to vector<128x4xf32>
    %c0_2 = arith.constant 0 : index
    %c0_3 = arith.constant 0 : index
    %2 = vector.load %arg2[%c0_2, %c0_3] : memref<128x4xf32, #tpu.memory_space<vmem>>, vector<128x4xf32>
    %3 = arith.mulf %1, %2 : vector<128x4xf32>
    %4 = arith.truncf %3 : vector<128x4xf32> to vector<128x4xbf16>
    %c0_4 = arith.constant 0 : index
    %c0_5 = arith.constant 0 : index
    %5 = vector.load %arg5[%c0_4, %c0_5] : memref<4x32xbf16, #tpu.memory_space<vmem>>, vector<4x32xbf16>
    %cst = arith.constant dense<0.000000e+00> : vector<128x32xf32>
    %6 = tpu.matmul %4, %5, %cst {dimension_numbers = #tpu.dot_dimension_numbers<[1], [0], [0], [1], [0, 0, 1, 1], [], []>} : vector<128x4xbf16>, vector<4x32xbf16>, vector<128x32xf32> -> vector<128x32xf32>
    %c0_6 = arith.constant 0 : index
    %c0_7 = arith.constant 0 : index
    %7 = vector.load %arg6[%c0_6, %c0_7] : memref<128x32xf32, #tpu.memory_space<vmem>>, vector<128x32xf32>
    %8 = arith.addf %6, %7 : vector<128x32xf32>
    %c0_8 = arith.constant 0 : index
    %c0_9 = arith.constant 0 : index
    %9 = vector.load %arg3[%c0_8, %c0_9] : memref<128x128xbf16, #tpu.memory_space<vmem>>, vector<128x128xbf16>
    %10 = arith.truncf %8 : vector<128x32xf32> to vector<128x32xbf16>
    %cst_10 = arith.constant dense<0.000000e+00> : vector<128x32xf32>
    %11 = tpu.matmul %9, %10, %cst_10 {dimension_numbers = #tpu.dot_dimension_numbers<[1], [0], [0], [1], [0, 0, 1, 1], [], []>} : vector<128x128xbf16>, vector<128x32xbf16>, vector<128x32xf32> -> vector<128x32xf32>
    %12 = arith.truncf %11 : vector<128x32xf32> to vector<128x32xbf16>
    %c0_11 = arith.constant 0 : index
    %c0_12 = arith.constant 0 : index
    %13 = vector.load %arg7[%c0_11, %c0_12] : memref<32x4xbf16, #tpu.memory_space<vmem>>, vector<32x4xbf16>
    %cst_13 = arith.constant dense<0.000000e+00> : vector<128x4xf32>
    %14 = tpu.matmul %12, %13, %cst_13 {dimension_numbers = #tpu.dot_dimension_numbers<[1], [0], [0], [1], [0, 0, 1, 1], [], []>} : vector<128x32xbf16>, vector<32x4xbf16>, vector<128x4xf32> -> vector<128x4xf32>
    %c0_14 = arith.constant 0 : index
    %c0_15 = arith.constant 0 : index
    %15 = vector.load %arg8[%c0_14, %c0_15] : memref<1x4xf32, #tpu.memory_space<vmem>>, vector<1x4xf32>
    %16 = vector.broadcast %15 : vector<1x4xf32> to vector<128x4xf32>
    %17 = arith.addf %14, %16 : vector<128x4xf32>
    %cst_16 = arith.constant 0.000000e+00 : f32
    %18 = vector.broadcast %cst_16 : f32 to vector<128x4xf32>
    %19 = arith.cmpf ogt, %17, %18 : vector<128x4xf32>
    %cst_17 = arith.constant 0.00999999977 : f32
    %20 = vector.broadcast %cst_17 : f32 to vector<128x4xf32>
    %21 = arith.mulf %20, %17 : vector<128x4xf32>
    %22 = arith.select %19, %17, %21 : vector<128x4xi1>, vector<128x4xf32>
    %23 = arith.truncf %22 : vector<128x4xf32> to vector<128x4xbf16>
    %c0_18 = arith.constant 0 : index
    %c0_19 = arith.constant 0 : index
    %24 = vector.load %arg9[%c0_18, %c0_19] : memref<4x32xbf16, #tpu.memory_space<vmem>>, vector<4x32xbf16>
    %cst_20 = arith.constant dense<0.000000e+00> : vector<128x32xf32>
    %25 = tpu.matmul %23, %24, %cst_20 {dimension_numbers = #tpu.dot_dimension_numbers<[1], [0], [0], [1], [0, 0, 1, 1], [], []>} : vector<128x4xbf16>, vector<4x32xbf16>, vector<128x32xf32> -> vector<128x32xf32>
    %c0_21 = arith.constant 0 : index
    %c0_22 = arith.constant 0 : index
    %26 = vector.load %arg10[%c0_21, %c0_22] : memref<1x32xf32, #tpu.memory_space<vmem>>, vector<1x32xf32>
    %27 = vector.broadcast %26 : vector<1x32xf32> to vector<128x32xf32>
    %28 = arith.addf %25, %27 : vector<128x32xf32>
    %cst_23 = arith.constant 0.000000e+00 : f32
    %29 = vector.broadcast %cst_23 : f32 to vector<128x32xf32>
    %30 = arith.cmpf ogt, %28, %29 : vector<128x32xf32>
    %cst_24 = arith.constant 0.00999999977 : f32
    %31 = vector.broadcast %cst_24 : f32 to vector<128x32xf32>
    %32 = arith.mulf %31, %28 : vector<128x32xf32>
    %33 = arith.select %30, %28, %32 : vector<128x32xi1>, vector<128x32xf32>
    %cst_25 = arith.constant 0.000000e+00 : f32
    %34 = vector.broadcast %cst_25 : f32 to vector<128x32xf32>
    %35 = arith.maximumf %33, %34 : vector<128x32xf32>
    %36 = arith.truncf %35 : vector<128x32xf32> to vector<128x32xbf16>
    %c0_26 = arith.constant 0 : index
    %c0_27 = arith.constant 0 : index
    %37 = vector.load %arg11[%c0_26, %c0_27] : memref<32x128xbf16, #tpu.memory_space<vmem>>, vector<32x128xbf16>
    %cst_28 = arith.constant dense<0.000000e+00> : vector<128x128xf32>
    %38 = tpu.matmul %36, %37, %cst_28 {dimension_numbers = #tpu.dot_dimension_numbers<[1], [0], [0], [1], [0, 0, 1, 1], [], []>} : vector<128x32xbf16>, vector<32x128xbf16>, vector<128x128xf32> -> vector<128x128xf32>
    %c0_29 = arith.constant 0 : index
    %c0_30 = arith.constant 0 : index
    %39 = vector.load %arg12[%c0_29, %c0_30] : memref<1x128xf32, #tpu.memory_space<vmem>>, vector<1x128xf32>
    %40 = vector.broadcast %39 : vector<1x128xf32> to vector<128x128xf32>
    %41 = arith.addf %38, %40 : vector<128x128xf32>
    %42 = vector.extract_strided_slice %41 {offsets = [0, 0], sizes = [128, 64], strides = [1, 1]} : vector<128x128xf32> to vector<128x64xf32>
    %43 = vector.extract_strided_slice %41 {offsets = [0, 64], sizes = [128, 64], strides = [1, 1]} : vector<128x128xf32> to vector<128x64xf32>
    %c0_31 = arith.constant 0 : index
    %c0_32 = arith.constant 0 : index
    %44 = vector.load %arg4[%c0_31, %c0_32] : memref<128x128xbf16, #tpu.memory_space<vmem>>, vector<128x128xbf16>
    %45 = arith.truncf %42 : vector<128x64xf32> to vector<128x64xbf16>
    %cst_33 = arith.constant dense<0.000000e+00> : vector<128x64xf32>
    %46 = tpu.matmul %44, %45, %cst_33 {dimension_numbers = #tpu.dot_dimension_numbers<[1], [0], [0], [1], [0, 0, 1, 1], [], []>} : vector<128x128xbf16>, vector<128x64xbf16>, vector<128x64xf32> -> vector<128x64xf32>
    %47 = arith.truncf %46 : vector<128x64xf32> to vector<128x64xbf16>
    %c0_34 = arith.constant 0 : index
    %c0_35 = arith.constant 0 : index
    %48 = vector.load %arg13[%c0_34, %c0_35] : memref<64x32xbf16, #tpu.memory_space<vmem>>, vector<64x32xbf16>
    %cst_36 = arith.constant dense<0.000000e+00> : vector<128x32xf32>
    %49 = tpu.matmul %47, %48, %cst_36 {dimension_numbers = #tpu.dot_dimension_numbers<[1], [0], [0], [1], [0, 0, 1, 1], [], []>} : vector<128x64xbf16>, vector<64x32xbf16>, vector<128x32xf32> -> vector<128x32xf32>
    %c0_37 = arith.constant 0 : index
    %c0_38 = arith.constant 0 : index
    %50 = vector.load %arg14[%c0_37, %c0_38] : memref<1x32xf32, #tpu.memory_space<vmem>>, vector<1x32xf32>
    %51 = vector.broadcast %50 : vector<1x32xf32> to vector<128x32xf32>
    %52 = arith.addf %49, %51 : vector<128x32xf32>
    %cst_39 = arith.constant 0.000000e+00 : f32
    %53 = vector.broadcast %cst_39 : f32 to vector<128x32xf32>
    %54 = arith.cmpf ogt, %52, %53 : vector<128x32xf32>
    %cst_40 = arith.constant 0.00999999977 : f32
    %55 = vector.broadcast %cst_40 : f32 to vector<128x32xf32>
    %56 = arith.mulf %55, %52 : vector<128x32xf32>
    %57 = arith.select %54, %52, %56 : vector<128x32xi1>, vector<128x32xf32>
    %58 = arith.truncf %57 : vector<128x32xf32> to vector<128x32xbf16>
    %c0_41 = arith.constant 0 : index
    %c0_42 = arith.constant 0 : index
    %59 = vector.load %arg15[%c0_41, %c0_42] : memref<32x64xbf16, #tpu.memory_space<vmem>>, vector<32x64xbf16>
    %cst_43 = arith.constant dense<0.000000e+00> : vector<128x64xf32>
    %60 = tpu.matmul %58, %59, %cst_43 {dimension_numbers = #tpu.dot_dimension_numbers<[1], [0], [0], [1], [0, 0, 1, 1], [], []>} : vector<128x32xbf16>, vector<32x64xbf16>, vector<128x64xf32> -> vector<128x64xf32>
    %c0_44 = arith.constant 0 : index
    %c0_45 = arith.constant 0 : index
    %61 = vector.load %arg16[%c0_44, %c0_45] : memref<1x64xf32, #tpu.memory_space<vmem>>, vector<1x64xf32>
    %62 = vector.broadcast %61 : vector<1x64xf32> to vector<128x64xf32>
    %63 = arith.addf %60, %62 : vector<128x64xf32>
    %cst_46 = arith.constant 0.000000e+00 : f32
    %64 = vector.broadcast %cst_46 : f32 to vector<128x64xf32>
    %65 = arith.cmpf ogt, %63, %64 : vector<128x64xf32>
    %cst_47 = arith.constant 0.00999999977 : f32
    %66 = vector.broadcast %cst_47 : f32 to vector<128x64xf32>
    %67 = arith.mulf %66, %63 : vector<128x64xf32>
    %68 = arith.select %65, %63, %67 : vector<128x64xi1>, vector<128x64xf32>
    %69 = arith.addf %68, %43 : vector<128x64xf32>
    %cst_48 = arith.constant 0.000000e+00 : f32
    %70 = vector.broadcast %cst_48 : f32 to vector<128x64xf32>
    %71 = arith.maximumf %69, %70 : vector<128x64xf32>
    %c0_49 = arith.constant 0 : index
    %c0_50 = arith.constant 0 : index
    %72 = vector.load %arg17[%c0_49, %c0_50] : memref<8x128xf32, #tpu.memory_space<vmem>>, vector<8x128xf32>
    %cst_51 = arith.constant dense<0.000000e+00> : vector<8x64xf32>
    %73 = tpu.matmul %72, %71, %cst_51 {dimension_numbers = #tpu.dot_dimension_numbers<[1], [0], [0], [1], [0, 0, 1, 1], [], []>} : vector<8x128xf32>, vector<128x64xf32>, vector<8x64xf32> -> vector<8x64xf32>
    %c0_52 = arith.constant 0 : index
    %c0_53 = arith.constant 0 : index
    %74 = vector.load %arg18[%c0_52, %c0_53] : memref<64x64xf32, #tpu.memory_space<vmem>>, vector<64x64xf32>
    %cst_54 = arith.constant dense<0.000000e+00> : vector<8x64xf32>
    %75 = tpu.matmul %73, %74, %cst_54 {dimension_numbers = #tpu.dot_dimension_numbers<[1], [0], [0], [1], [0, 0, 1, 1], [], []>} : vector<8x64xf32>, vector<64x64xf32>, vector<8x64xf32> -> vector<8x64xf32>
    %c0_55 = arith.constant 0 : index
    %c0_56 = arith.constant 0 : index
    %76 = vector.load %arg19[%c0_55, %c0_56] : memref<1x64xf32, #tpu.memory_space<vmem>>, vector<1x64xf32>
    %77 = vector.broadcast %76 : vector<1x64xf32> to vector<8x64xf32>
    %78 = arith.addf %75, %77 : vector<8x64xf32>
    %79 = math.tanh %78 : vector<8x64xf32>
    %c0_57 = arith.constant 0 : index
    %c0_58 = arith.constant 0 : index
    %80 = vector.load %arg20[%c0_57, %c0_58] : memref<64x1xf32, #tpu.memory_space<vmem>>, vector<64x1xf32>
    %cst_59 = arith.constant dense<0.000000e+00> : vector<8x1xf32>
    %81 = tpu.matmul %79, %80, %cst_59 {dimension_numbers = #tpu.dot_dimension_numbers<[1], [0], [0], [1], [0, 0, 1, 1], [], []>} : vector<8x64xf32>, vector<64x1xf32>, vector<8x1xf32> -> vector<8x1xf32>
    %c0_60 = arith.constant 0 : index
    %c0_61 = arith.constant 0 : index
    %82 = vector.load %arg21[%c0_60, %c0_61] : memref<1x1xf32, #tpu.memory_space<vmem>>, vector<1x1xf32>
    %83 = vector.broadcast %82 : vector<1x1xf32> to vector<8x1xf32>
    %84 = arith.addf %81, %83 : vector<8x1xf32>
    %cst_62 = arith.constant dense<0xFF800000> : vector<1xf32>
    %85 = vector.multi_reduction <maximumf>, %84, %cst_62 [0] : vector<8x1xf32> to vector<1xf32>
    %86 = vector.shape_cast %85 : vector<1xf32> to vector<1x1xf32>
    %87 = vector.broadcast %86 : vector<1x1xf32> to vector<8x1xf32>
    %88 = arith.subf %84, %87 : vector<8x1xf32>
    %89 = math.exp %88 : vector<8x1xf32>
    %cst_63 = arith.constant dense<0.000000e+00> : vector<1xf32>
    %90 = vector.multi_reduction <add>, %89, %cst_63 [0] : vector<8x1xf32> to vector<1xf32>
    %91 = vector.shape_cast %90 : vector<1xf32> to vector<1x1xf32>
    %92 = vector.broadcast %91 : vector<1x1xf32> to vector<8x1xf32>
    %93 = arith.divf %89, %92 : vector<8x1xf32>
    %94 = vector.broadcast %93 : vector<8x1xf32> to vector<8x64xf32>
    %95 = arith.mulf %94, %73 : vector<8x64xf32>
    %cst_64 = arith.constant dense<0.000000e+00> : vector<64xf32>
    %96 = vector.multi_reduction <add>, %95, %cst_64 [0] : vector<8x64xf32> to vector<64xf32>
    %97 = vector.shape_cast %96 : vector<64xf32> to vector<1x64xf32>
    %c0_65 = arith.constant 0 : index
    %c0_66 = arith.constant 0 : index
    %98 = vector.load %arg22[%c0_65, %c0_66] : memref<64x128xf32, #tpu.memory_space<vmem>>, vector<64x128xf32>
    %cst_67 = arith.constant dense<0.000000e+00> : vector<1x128xf32>
    %99 = tpu.matmul %97, %98, %cst_67 {dimension_numbers = #tpu.dot_dimension_numbers<[1], [0], [0], [1], [0, 0, 1, 1], [], []>} : vector<1x64xf32>, vector<64x128xf32>, vector<1x128xf32> -> vector<1x128xf32>
    %c0_68 = arith.constant 0 : index
    %c0_69 = arith.constant 0 : index
    %100 = vector.load %arg23[%c0_68, %c0_69] : memref<1x128xf32, #tpu.memory_space<vmem>>, vector<1x128xf32>
    %101 = arith.addf %99, %100 : vector<1x128xf32>
    %c0_70 = arith.constant 0 : index
    %c0_71 = arith.constant 0 : index
    %c0_72 = arith.constant 0 : index
    %102 = vector.load %arg24[%c0_70, %c0_71, %c0_72] : memref<1x1x128xf32, #tpu.memory_space<vmem>>, vector<1x1x128xf32>
    %103 = vector.shape_cast %102 : vector<1x1x128xf32> to vector<1x128xf32>
    %104 = vector.shape_cast %101 : vector<1x128xf32> to vector<1x1x128xf32>
    tpu.vector_store %arg24[%c0_70, %c0_71, %c0_72], %104 {strides = array<i32>} : memref<1x1x128xf32, #tpu.memory_space<vmem>>, vector<1x1x128xf32>,
    return
  }
  func.func @transform_0(%arg0: i32) -> (i32, i32, i32) {
    %c0_i32 = arith.constant 0 : i32
    %c0_i32_0 = arith.constant 0 : i32
    %c0_i32_1 = arith.constant 0 : i32
    return %arg0, %c0_i32, %c0_i32_0 : i32, i32, i32
  }
  func.func @transform_1(%arg0: i32) -> (i32, i32) {
    %c0_i32 = arith.constant 0 : i32
    %c0_i32_0 = arith.constant 0 : i32
    %c0_i32_1 = arith.constant 0 : i32
    return %c0_i32, %c0_i32_0 : i32, i32
  }
  func.func @transform_2(%arg0: i32) -> (i32, i32) {
    %c0_i32 = arith.constant 0 : i32
    %c0_i32_0 = arith.constant 0 : i32
    %c0_i32_1 = arith.constant 0 : i32
    return %c0_i32, %c0_i32_0 : i32, i32
  }
  func.func @transform_3(%arg0: i32) -> (i32, i32) {
    %c0_i32 = arith.constant 0 : i32
    %c0_i32_0 = arith.constant 0 : i32
    %c0_i32_1 = arith.constant 0 : i32
    return %c0_i32, %c0_i32_0 : i32, i32
  }
  func.func @transform_4(%arg0: i32) -> (i32, i32) {
    %c0_i32 = arith.constant 0 : i32
    %c0_i32_0 = arith.constant 0 : i32
    %c0_i32_1 = arith.constant 0 : i32
    return %c0_i32, %c0_i32_0 : i32, i32
  }
  func.func @transform_5(%arg0: i32) -> (i32, i32) {
    %c0_i32 = arith.constant 0 : i32
    %c0_i32_0 = arith.constant 0 : i32
    %c0_i32_1 = arith.constant 0 : i32
    return %c0_i32, %c0_i32_0 : i32, i32
  }
  func.func @transform_6(%arg0: i32) -> (i32, i32) {
    %c0_i32 = arith.constant 0 : i32
    %c0_i32_0 = arith.constant 0 : i32
    %c0_i32_1 = arith.constant 0 : i32
    return %c0_i32, %c0_i32_0 : i32, i32
  }
  func.func @transform_7(%arg0: i32) -> (i32, i32) {
    %c0_i32 = arith.constant 0 : i32
    %c0_i32_0 = arith.constant 0 : i32
    %c0_i32_1 = arith.constant 0 : i32
    return %c0_i32, %c0_i32_0 : i32, i32
  }
  func.func @transform_8(%arg0: i32) -> (i32, i32) {
    %c0_i32 = arith.constant 0 : i32
    %c0_i32_0 = arith.constant 0 : i32
    %c0_i32_1 = arith.constant 0 : i32
    return %c0_i32, %c0_i32_0 : i32, i32
  }
  func.func @transform_9(%arg0: i32) -> (i32, i32) {
    %c0_i32 = arith.constant 0 : i32
    %c0_i32_0 = arith.constant 0 : i32
    %c0_i32_1 = arith.constant 0 : i32
    return %c0_i32, %c0_i32_0 : i32, i32
  }
  func.func @transform_10(%arg0: i32) -> (i32, i32) {
    %c0_i32 = arith.constant 0 : i32
    %c0_i32_0 = arith.constant 0 : i32
    %c0_i32_1 = arith.constant 0 : i32
    return %c0_i32, %c0_i32_0 : i32, i32
  }
  func.func @transform_11(%arg0: i32) -> (i32, i32) {
    %c0_i32 = arith.constant 0 : i32
    %c0_i32_0 = arith.constant 0 : i32
    %c0_i32_1 = arith.constant 0 : i32
    return %c0_i32, %c0_i32_0 : i32, i32
  }
  func.func @transform_12(%arg0: i32) -> (i32, i32) {
    %c0_i32 = arith.constant 0 : i32
    %c0_i32_0 = arith.constant 0 : i32
    %c0_i32_1 = arith.constant 0 : i32
    return %c0_i32, %c0_i32_0 : i32, i32
  }
  func.func @transform_13(%arg0: i32) -> (i32, i32) {
    %c0_i32 = arith.constant 0 : i32
    %c0_i32_0 = arith.constant 0 : i32
    %c0_i32_1 = arith.constant 0 : i32
    return %c0_i32, %c0_i32_0 : i32, i32
  }
  func.func @transform_14(%arg0: i32) -> (i32, i32) {
    %c0_i32 = arith.constant 0 : i32
    %c0_i32_0 = arith.constant 0 : i32
    %c0_i32_1 = arith.constant 0 : i32
    return %c0_i32, %c0_i32_0 : i32, i32
  }
  func.func @transform_15(%arg0: i32) -> (i32, i32) {
    %c0_i32 = arith.constant 0 : i32
    %c0_i32_0 = arith.constant 0 : i32
    %c0_i32_1 = arith.constant 0 : i32
    return %c0_i32, %c0_i32_0 : i32, i32
  }
  func.func @transform_16(%arg0: i32) -> (i32, i32) {
    %c0_i32 = arith.constant 0 : i32
    %c0_i32_0 = arith.constant 0 : i32
    %c0_i32_1 = arith.constant 0 : i32
    return %c0_i32, %c0_i32_0 : i32, i32
  }
  func.func @transform_17(%arg0: i32) -> (i32, i32) {
    %c0_i32 = arith.constant 0 : i32
    %c0_i32_0 = arith.constant 0 : i32
    %c0_i32_1 = arith.constant 0 : i32
    return %c0_i32, %c0_i32_0 : i32, i32
  }
  func.func @transform_18(%arg0: i32) -> (i32, i32) {
    %c0_i32 = arith.constant 0 : i32
    %c0_i32_0 = arith.constant 0 : i32
    %c0_i32_1 = arith.constant 0 : i32
    return %c0_i32, %c0_i32_0 : i32, i32
  }
  func.func @transform_19(%arg0: i32) -> (i32, i32) {
    %c0_i32 = arith.constant 0 : i32
    %c0_i32_0 = arith.constant 0 : i32
    %c0_i32_1 = arith.constant 0 : i32
    return %c0_i32, %c0_i32_0 : i32, i32
  }
  func.func @transform_20(%arg0: i32) -> (i32, i32) {
    %c0_i32 = arith.constant 0 : i32
    %c0_i32_0 = arith.constant 0 : i32
    %c0_i32_1 = arith.constant 0 : i32
    return %c0_i32, %c0_i32_0 : i32, i32
  }
  func.func @transform_21(%arg0: i32) -> (i32, i32) {
    %c0_i32 = arith.constant 0 : i32
    %c0_i32_0 = arith.constant 0 : i32
    %c0_i32_1 = arith.constant 0 : i32
    return %c0_i32, %c0_i32_0 : i32, i32
  }
  func.func @transform_22(%arg0: i32) -> (i32, i32) {
    %c0_i32 = arith.constant 0 : i32
    %c0_i32_0 = arith.constant 0 : i32
    %c0_i32_1 = arith.constant 0 : i32
    return %c0_i32, %c0_i32_0 : i32, i32
  }
  func.func @transform_23(%arg0: i32) -> (i32, i32, i32) {
    %c0_i32 = arith.constant 0 : i32
    %c0_i32_0 = arith.constant 0 : i32
    %c0_i32_1 = arith.constant 0 : i32
    return %arg0, %c0_i32, %c0_i32_0 : i32, i32, i32
  }
}

</mosaic_0001>

<llo_original>
// kernel: sagcn_forward.1
$region0: #{sagcn_forward.1}
  #allocation0 [shape = 'u32[]', space=smem, size = 0x4, offset = 0x4, fixed_abs, tag = 'smem constant byte address 0x4 - core index']
  #allocation1 [shape = 'u32[144,128]{1,0:T(1,128)}', space=vmem, size = 0x12000, scoped, tag = 'internal scratch']
  #allocation2 [shape = 'f32[1,1]{1,0:T(1,128)S(1)}', space=vmem, size = 0x200, scoped, tag = 'scoped memory for sagcn_forward.1']
  %s0 = inlined_call_operand.vmem [shape: f32[2,128,4], index: 0, kind: input, shape index: {}]
  %s1 = inlined_call_operand.vmem [shape: f32[128,4], index: 1, kind: input, shape index: {}]
  %s2 = inlined_call_operand.vmem [shape: bf16[128,128], index: 2, kind: input, shape index: {}]
  %s3 = inlined_call_operand.vmem [shape: bf16[128,128], index: 3, kind: input, shape index: {}]
  %s4 = inlined_call_operand.vmem [shape: bf16[4,32], index: 4, kind: input, shape index: {}]
  %s5 = inlined_call_operand.vmem [shape: f32[128,32], index: 5, kind: input, shape index: {}]
  %s6 = inlined_call_operand.vmem [shape: bf16[32,4], index: 6, kind: input, shape index: {}]
  %s7 = inlined_call_operand.vmem [shape: f32[1,4], index: 7, kind: input, shape index: {}]
  %s8 = inlined_call_operand.vmem [shape: bf16[4,32], index: 8, kind: input, shape index: {}]
  %s9 = inlined_call_operand.vmem [shape: f32[1,32], index: 9, kind: input, shape index: {}]
  %s10 = inlined_call_operand.vmem [shape: bf16[32,128], index: 10, kind: input, shape index: {}]
  %s11 = inlined_call_operand.vmem [shape: f32[1,128], index: 11, kind: input, shape index: {}]
  %s12 = inlined_call_operand.vmem [shape: bf16[64,32], index: 12, kind: input, shape index: {}]
  %s13 = inlined_call_operand.vmem [shape: f32[1,32], index: 13, kind: input, shape index: {}]
  %s14 = inlined_call_operand.vmem [shape: bf16[32,64], index: 14, kind: input, shape index: {}]
  %s15 = inlined_call_operand.vmem [shape: f32[1,64], index: 15, kind: input, shape index: {}]
  %s16 = inlined_call_operand.vmem [shape: f32[8,128], index: 16, kind: input, shape index: {}]
  %s17 = inlined_call_operand.vmem [shape: f32[64,64], index: 17, kind: input, shape index: {}]
  %s18 = inlined_call_operand.vmem [shape: f32[1,64], index: 18, kind: input, shape index: {}]
  %s19 = inlined_call_operand.vmem [shape: f32[64,1], index: 19, kind: input, shape index: {}]
  %s20 = inlined_call_operand.<no memory space> [shape: f32[1,1], index: 20, kind: input, shape index: {}]
  %s21 = inlined_call_operand.vmem [shape: f32[64,128], index: 21, kind: input, shape index: {}]
  %s22 = inlined_call_operand.vmem [shape: f32[1,128], index: 22, kind: input, shape index: {}]
  %s23 = inlined_call_operand.hbm [shape: f32[2,1,128], index: 23, kind: output, shape index: {}]
  %s24 = sld [smem:[#allocation0]]
  $region125: #{sagcn_forward.1} parent=0
    _
  %s26 = ssub.s32 1, %s24
  %s27 = scalar_select 0, %s26, %s24
  %v28 = vstv %s20
  %29 = vst [vmem:[#allocation2] sm:$0x1] %v28
  $region1: #{sagcn_forward.1} parent=0
    #allocation3 [shape = 'u8[1024]{0}', space=vmem, size = 0x400, scoped, tag = 'output window, operand 0']
    #allocation4 [shape = 's32[2]{0}', space=sflag, size = 0x8, scoped, tag = 'scoped memory for sagcn_forward.1']
    %30 = vsyncpa [#allocation4], 0
    %s31 = scalar_lea.sflag [#allocation4], 1
    %32 = vsyncpa %s31, 0
    loop: start=0, step=1, limit=4
    $region2: #{sagcn_forward.1} parent=1 // loop_pre_header
      _
    $region3: #{sagcn_forward.1} parent=1 // loop_header
      %s34 = sphi 0, %s38
      %p35 = scmp.ge.s32.totalorder %s34, 4
      %s44 = sphi 0, %s46
      %s47 = sphi 0, %s44
      %s48 = sphi 0, %s47
      %s64 = sphi 0, %s48
      %s68 = sphi 0, %s68
      %s70 = sphi 0, %s68
      %s71 = sphi 0, %s70
      %s85 = sphi 0, %s71
      %s89 = sphi 0, %s89
      %s91 = sphi 0, %s89
      %s92 = sphi 0, %s91
      %s106 = sphi 0, %s92
      %s110 = sphi 0, %s110
      %s112 = sphi 0, %s110
      %s113 = sphi 0, %s112
      %s127 = sphi 0, %s113
      %s131 = sphi 0, %s131
      %s133 = sphi 0, %s131
      %s134 = sphi 0, %s133
      %s148 = sphi 0, %s134
      %s152 = sphi 0, %s152
      %s154 = sphi 0, %s152
      %s155 = sphi 0, %s154
      %s169 = sphi 0, %s155
      %s173 = sphi 0, %s173
      %s175 = sphi 0, %s173
      %s176 = sphi 0, %s175
      %s190 = sphi 0, %s176
      %s194 = sphi 0, %s194
      %s196 = sphi 0, %s194
      %s197 = sphi 0, %s196
      %s211 = sphi 0, %s197
      %s215 = sphi 0, %s215
      %s217 = sphi 0, %s215
      %s218 = sphi 0, %s217
      %s232 = sphi 0, %s218
      %s236 = sphi 0, %s236
      %s238 = sphi 0, %s236
      %s239 = sphi 0, %s238
      %s253 = sphi 0, %s239
      %s257 = sphi 0, %s257
      %s259 = sphi 0, %s257
      %s260 = sphi 0, %s259
      %s274 = sphi 0, %s260
      %s278 = sphi 0, %s278
      %s280 = sphi 0, %s278
      %s281 = sphi 0, %s280
      %s295 = sphi 0, %s281
      %s299 = sphi 0, %s299
      %s301 = sphi 0, %s299
      %s302 = sphi 0, %s301
      %s316 = sphi 0, %s302
      %s320 = sphi 0, %s320
      %s322 = sphi 0, %s320
      %s323 = sphi 0, %s322
      %s337 = sphi 0, %s323
      %s341 = sphi 0, %s341
      %s343 = sphi 0, %s341
      %s344 = sphi 0, %s343
      %s358 = sphi 0, %s344
      %s362 = sphi 0, %s362
      %s364 = sphi 0, %s362
      %s365 = sphi 0, %s364
      %s379 = sphi 0, %s365
      %s383 = sphi 0, %s383
      %s385 = sphi 0, %s383
      %s386 = sphi 0, %s385
      %s400 = sphi 0, %s386
      %s404 = sphi 0, %s404
      %s406 = sphi 0, %s404
      %s407 = sphi 0, %s406
      %s421 = sphi 0, %s407
      %s425 = sphi 0, %s425
      %s427 = sphi 0, %s425
      %s428 = sphi 0, %s427
      %s442 = sphi 0, %s428
      %s446 = sphi 0, %s446
      %s448 = sphi 0, %s446
      %s449 = sphi 0, %s448
      %s463 = sphi 0, %s449
      %s467 = sphi 0, %s467
      %s469 = sphi 0, %s467
      %s470 = sphi 0, %s469
      %s484 = sphi 0, %s470
      %s488 = sphi 0, %s488
      %s490 = sphi 0, %s488
      %s491 = sphi 0, %s490
      %s505 = sphi 0, %s491
      %s509 = sphi 0, %s509
      %s511 = sphi 0, %s509
      %s512 = sphi 0, %s511
      %s526 = sphi 0, %s512
      %s532 = sphi 0, %s534
      %s535 = sphi 0, %s532
      %s536 = sphi 0, %s535
      %s552 = sphi 0, %s536
    $region4: #{sagcn_forward.1} parent=1 // loop_header_branch
      %37 = sbr.rel (%p35) target = $region8
    $region5: #{sagcn_forward.1} parent=1 // loop_body
      %s39 = ssub.s32 %s34, 1
      %s40 = ssub.s32 %s34, 2
      %s41 = sadd.s32 %s34, 1
      %s42 = ssub.s32 %s34, %s41
      %p43 = scmp.eq.s32.totalorder %s42, 0
      %s45 = sadd.s32 %s44, 1
      %s46 = scalar_select %p43, %s44, %s45
      %p49 = pneg %p43
      %p50 = scmp.eq.s32.totalorder %s34, 1
      %p51 = por %p49, %p50
      %p52 = scmp.ne.s32.totalorder %s44, %s47
      %p53 = scmp.eq.s32.totalorder %s34, 0
      %p54 = por %p52, %p53
      %p55 = scmp.ne.s32.totalorder %s44, %s47
      %p56 = scmp.eq.s32.totalorder %s39, 1
      %p57 = por %p55, %p56
      %p58 = scmp.ne.s32.totalorder %s47, %s48
      %p59 = scmp.eq.s32.totalorder %s39, 0
      %p60 = por %p58, %p59
      %p61 = scmp.ne.s32.totalorder %s47, %s48
      %p62 = scmp.eq.s32.totalorder %s40, 1
      %p63 = por %p61, %p62
      %p65 = scmp.ne.s32.totalorder %s48, %s64
      %p66 = scmp.eq.s32.totalorder %s40, 0
      %p67 = por %p65, %p66
      %s69 = sadd.s32 %s68, 1
      %p72 = scmp.eq.s32.totalorder %s34, 1
      %p73 = scmp.ne.s32.totalorder %s68, %s70
      %p74 = scmp.eq.s32.totalorder %s34, 0
      %p75 = por %p73, %p74
      %p76 = scmp.ne.s32.totalorder %s68, %s70
      %p77 = scmp.eq.s32.totalorder %s39, 1
      %p78 = por %p76, %p77
      %p79 = scmp.ne.s32.totalorder %s70, %s71
      %p80 = scmp.eq.s32.totalorder %s39, 0
      %p81 = por %p79, %p80
      %p82 = scmp.ne.s32.totalorder %s70, %s71
      %p83 = scmp.eq.s32.totalorder %s40, 1
      %p84 = por %p82, %p83
      %p86 = scmp.ne.s32.totalorder %s71, %s85
      %p87 = scmp.eq.s32.totalorder %s40, 0
      %p88 = por %p86, %p87
      %s90 = sadd.s32 %s89, 1
      %p93 = scmp.eq.s32.totalorder %s34, 1
      %p94 = scmp.ne.s32.totalorder %s89, %s91
      %p95 = scmp.eq.s32.totalorder %s34, 0
      %p96 = por %p94, %p95
      %p97 = scmp.ne.s32.totalorder %s89, %s91
      %p98 = scmp.eq.s32.totalorder %s39, 1
      %p99 = por %p97, %p98
      %p100 = scmp.ne.s32.totalorder %s91, %s92
      %p101 = scmp.eq.s32.totalorder %s39, 0
      %p102 = por %p100, %p101
      %p103 = scmp.ne.s32.totalorder %s91, %s92
      %p104 = scmp.eq.s32.totalorder %s40, 1
      %p105 = por %p103, %p104
      %p107 = scmp.ne.s32.totalorder %s92, %s106
      %p108 = scmp.eq.s32.totalorder %s40, 0
      %p109 = por %p107, %p108
      %s111 = sadd.s32 %s110, 1
      %p114 = scmp.eq.s32.totalorder %s34, 1
      %p115 = scmp.ne.s32.totalorder %s110, %s112
      %p116 = scmp.eq.s32.totalorder %s34, 0
      %p117 = por %p115, %p116
      %p118 = scmp.ne.s32.totalorder %s110, %s112
      %p119 = scmp.eq.s32.totalorder %s39, 1
      %p120 = por %p118, %p119
      %p121 = scmp.ne.s32.totalorder %s112, %s113
      %p122 = scmp.eq.s32.totalorder %s39, 0
      %p123 = por %p121, %p122
      %p124 = scmp.ne.s32.totalorder %s112, %s113
      %p125 = scmp.eq.s32.totalorder %s40, 1
      %p126 = por %p124, %p125
      %p128 = scmp.ne.s32.totalorder %s113, %s127
      %p129 = scmp.eq.s32.totalorder %s40, 0
      %p130 = por %p128, %p129
      %s132 = sadd.s32 %s131, 1
      %p135 = scmp.eq.s32.totalorder %s34, 1
      %p136 = scmp.ne.s32.totalorder %s131, %s133
      %p137 = scmp.eq.s32.totalorder %s34, 0
      %p138 = por %p136, %p137
      %p139 = scmp.ne.s32.totalorder %s131, %s133
      %p140 = scmp.eq.s32.totalorder %s39, 1
      %p141 = por %p139, %p140
      %p142 = scmp.ne.s32.totalorder %s133, %s134
      %p143 = scmp.eq.s32.totalorder %s39, 0
      %p144 = por %p142, %p143
      %p145 = scmp.ne.s32.totalorder %s133, %s134
      %p146 = scmp.eq.s32.totalorder %s40, 1
      %p147 = por %p145, %p146
      %p149 = scmp.ne.s32.totalorder %s134, %s148
      %p150 = scmp.eq.s32.totalorder %s40, 0
      %p151 = por %p149, %p150
      %s153 = sadd.s32 %s152, 1
      %p156 = scmp.eq.s32.totalorder %s34, 1
      %p157 = scmp.ne.s32.totalorder %s152, %s154
      %p158 = scmp.eq.s32.totalorder %s34, 0
      %p159 = por %p157, %p158
      %p160 = scmp.ne.s32.totalorder %s152, %s154
      %p161 = scmp.eq.s32.totalorder %s39, 1
      %p162 = por %p160, %p161
      %p163 = scmp.ne.s32.totalorder %s154, %s155
      %p164 = scmp.eq.s32.totalorder %s39, 0
      %p165 = por %p163, %p164
      %p166 = scmp.ne.s32.totalorder %s154, %s155
      %p167 = scmp.eq.s32.totalorder %s40, 1
      %p168 = por %p166, %p167
      %p170 = scmp.ne.s32.totalorder %s155, %s169
      %p171 = scmp.eq.s32.totalorder %s40, 0
      %p172 = por %p170, %p171
      %s174 = sadd.s32 %s173, 1
      %p177 = scmp.eq.s32.totalorder %s34, 1
      %p178 = scmp.ne.s32.totalorder %s173, %s175
      %p179 = scmp.eq.s32.totalorder %s34, 0
      %p180 = por %p178, %p179
      %p181 = scmp.ne.s32.totalorder %s173, %s175
      %p182 = scmp.eq.s32.totalorder %s39, 1
      %p183 = por %p181, %p182
      %p184 = scmp.ne.s32.totalorder %s175, %s176
      %p185 = scmp.eq.s32.totalorder %s39, 0
      %p186 = por %p184, %p185
      %p187 = scmp.ne.s32.totalorder %s175, %s176
      %p188 = scmp.eq.s32.totalorder %s40, 1
      %p189 = por %p187, %p188
      %p191 = scmp.ne.s32.totalorder %s176, %s190
      %p192 = scmp.eq.s32.totalorder %s40, 0
      %p193 = por %p191, %p192
      %s195 = sadd.s32 %s194, 1
      %p198 = scmp.eq.s32.totalorder %s34, 1
      %p199 = scmp.ne.s32.totalorder %s194, %s196
      %p200 = scmp.eq.s32.totalorder %s34, 0
      %p201 = por %p199, %p200
      %p202 = scmp.ne.s32.totalorder %s194, %s196
      %p203 = scmp.eq.s32.totalorder %s39, 1
      %p204 = por %p202, %p203
      %p205 = scmp.ne.s32.totalorder %s196, %s197
      %p206 = scmp.eq.s32.totalorder %s39, 0
      %p207 = por %p205, %p206
      %p208 = scmp.ne.s32.totalorder %s196, %s197
      %p209 = scmp.eq.s32.totalorder %s40, 1
      %p210 = por %p208, %p209
      %p212 = scmp.ne.s32.totalorder %s197, %s211
      %p213 = scmp.eq.s32.totalorder %s40, 0
      %p214 = por %p212, %p213
      %s216 = sadd.s32 %s215, 1
      %p219 = scmp.eq.s32.totalorder %s34, 1
      %p220 = scmp.ne.s32.totalorder %s215, %s217
      %p221 = scmp.eq.s32.totalorder %s34, 0
      %p222 = por %p220, %p221
      %p223 = scmp.ne.s32.totalorder %s215, %s217
      %p224 = scmp.eq.s32.totalorder %s39, 1
      %p225 = por %p223, %p224
      %p226 = scmp.ne.s32.totalorder %s217, %s218
      %p227 = scmp.eq.s32.totalorder %s39, 0
      %p228 = por %p226, %p227
      %p229 = scmp.ne.s32.totalorder %s217, %s218
      %p230 = scmp.eq.s32.totalorder %s40, 1
      %p231 = por %p229, %p230
      %p233 = scmp.ne.s32.totalorder %s218, %s232
      %p234 = scmp.eq.s32.totalorder %s40, 0
      %p235 = por %p233, %p234
      %s237 = sadd.s32 %s236, 1
      %p240 = scmp.eq.s32.totalorder %s34, 1
      %p241 = scmp.ne.s32.totalorder %s236, %s238
      %p242 = scmp.eq.s32.totalorder %s34, 0
      %p243 = por %p241, %p242
      %p244 = scmp.ne.s32.totalorder %s236, %s238
      %p245 = scmp.eq.s32.totalorder %s39, 1
      %p246 = por %p244, %p245
      %p247 = scmp.ne.s32.totalorder %s238, %s239
      %p248 = scmp.eq.s32.totalorder %s39, 0
      %p249 = por %p247, %p248
      %p250 = scmp.ne.s32.totalorder %s238, %s239
      %p251 = scmp.eq.s32.totalorder %s40, 1
      %p252 = por %p250, %p251
      %p254 = scmp.ne.s32.totalorder %s239, %s253
      %p255 = scmp.eq.s32.totalorder %s40, 0
      %p256 = por %p254, %p255
      %s258 = sadd.s32 %s257, 1
      %p261 = scmp.eq.s32.totalorder %s34, 1
      %p262 = scmp.ne.s32.totalorder %s257, %s259
      %p263 = scmp.eq.s32.totalorder %s34, 0
      %p264 = por %p262, %p263
      %p265 = scmp.ne.s32.totalorder %s257, %s259
      %p266 = scmp.eq.s32.totalorder %s39, 1
      %p267 = por %p265, %p266
      %p268 = scmp.ne.s32.totalorder %s259, %s260
      %p269 = scmp.eq.s32.totalorder %s39, 0
      %p270 = por %p268, %p269
      %p271 = scmp.ne.s32.totalorder %s259, %s260
      %p272 = scmp.eq.s32.totalorder %s40, 1
      %p273 = por %p271, %p272
      %p275 = scmp.ne.s32.totalorder %s260, %s274
      %p276 = scmp.eq.s32.totalorder %s40, 0
      %p277 = por %p275, %p276
      %s279 = sadd.s32 %s278, 1
      %p282 = scmp.eq.s32.totalorder %s34, 1
      %p283 = scmp.ne.s32.totalorder %s278, %s280
      %p284 = scmp.eq.s32.totalorder %s34, 0
      %p285 = por %p283, %p284
      %p286 = scmp.ne.s32.totalorder %s278, %s280
      %p287 = scmp.eq.s32.totalorder %s39, 1
      %p288 = por %p286, %p287
      %p289 = scmp.ne.s32.totalorder %s280, %s281
      %p290 = scmp.eq.s32.totalorder %s39, 0
      %p291 = por %p289, %p290
      %p292 = scmp.ne.s32.totalorder %s280, %s281
      %p293 = scmp.eq.s32.totalorder %s40, 1
      %p294 = por %p292, %p293
      %p296 = scmp.ne.s32.totalorder %s281, %s295
      %p297 = scmp.eq.s32.totalorder %s40, 0
      %p298 = por %p296, %p297
      %s300 = sadd.s32 %s299, 1
      %p303 = scmp.eq.s32.totalorder %s34, 1
      %p304 = scmp.ne.s32.totalorder %s299, %s301
      %p305 = scmp.eq.s32.totalorder %s34, 0
      %p306 = por %p304, %p305
      %p307 = scmp.ne.s32.totalorder %s299, %s301
      %p308 = scmp.eq.s32.totalorder %s39, 1
      %p309 = por %p307, %p308
      %p310 = scmp.ne.s32.totalorder %s301, %s302
      %p311 = scmp.eq.s32.totalorder %s39, 0
      %p312 = por %p310, %p311
      %p313 = scmp.ne.s32.totalorder %s301, %s302
      %p314 = scmp.eq.s32.totalorder %s40, 1
      %p315 = por %p313, %p314
      %p317 = scmp.ne.s32.totalorder %s302, %s316
      %p318 = scmp.eq.s32.totalorder %s40, 0
      %p319 = por %p317, %p318
      %s321 = sadd.s32 %s320, 1
      %p324 = scmp.eq.s32.totalorder %s34, 1
      %p325 = scmp.ne.s32.totalorder %s320, %s322
      %p326 = scmp.eq.s32.totalorder %s34, 0
      %p327 = por %p325, %p326
      %p328 = scmp.ne.s32.totalorder %s320, %s322
      %p329 = scmp.eq.s32.totalorder %s39, 1
      %p330 = por %p328, %p329
      %p331 = scmp.ne.s32.totalorder %s322, %s323
      %p332 = scmp.eq.s32.totalorder %s39, 0
      %p333 = por %p331, %p332
      %p334 = scmp.ne.s32.totalorder %s322, %s323
      %p335 = scmp.eq.s32.totalorder %s40, 1
      %p336 = por %p334, %p335
      %p338 = scmp.ne.s32.totalorder %s323, %s337
      %p339 = scmp.eq.s32.totalorder %s40, 0
      %p340 = por %p338, %p339
      %s342 = sadd.s32 %s341, 1
      %p345 = scmp.eq.s32.totalorder %s34, 1
      %p346 = scmp.ne.s32.totalorder %s341, %s343
      %p347 = scmp.eq.s32.totalorder %s34, 0
      %p348 = por %p346, %p347
      %p349 = scmp.ne.s32.totalorder %s341, %s343
      %p350 = scmp.eq.s32.totalorder %s39, 1
      %p351 = por %p349, %p350
      %p352 = scmp.ne.s32.totalorder %s343, %s344
      %p353 = scmp.eq.s32.totalorder %s39, 0
      %p354 = por %p352, %p353
      %p355 = scmp.ne.s32.totalorder %s343, %s344
      %p356 = scmp.eq.s32.totalorder %s40, 1
      %p357 = por %p355, %p356
      %p359 = scmp.ne.s32.totalorder %s344, %s358
      %p360 = scmp.eq.s32.totalorder %s40, 0
      %p361 = por %p359, %p360
      %s363 = sadd.s32 %s362, 1
      %p366 = scmp.eq.s32.totalorder %s34, 1
      %p367 = scmp.ne.s32.totalorder %s362, %s364
      %p368 = scmp.eq.s32.totalorder %s34, 0
      %p369 = por %p367, %p368
      %p370 = scmp.ne.s32.totalorder %s362, %s364
      %p371 = scmp.eq.s32.totalorder %s39, 1
      %p372 = por %p370, %p371
      %p373 = scmp.ne.s32.totalorder %s364, %s365
      %p374 = scmp.eq.s32.totalorder %s39, 0
      %p375 = por %p373, %p374
      %p376 = scmp.ne.s32.totalorder %s364, %s365
      %p377 = scmp.eq.s32.totalorder %s40, 1
      %p378 = por %p376, %p377
      %p380 = scmp.ne.s32.totalorder %s365, %s379
      %p381 = scmp.eq.s32.totalorder %s40, 0
      %p382 = por %p380, %p381
      %s384 = sadd.s32 %s383, 1
      %p387 = scmp.eq.s32.totalorder %s34, 1
      %p388 = scmp.ne.s32.totalorder %s383, %s385
      %p389 = scmp.eq.s32.totalorder %s34, 0
      %p390 = por %p388, %p389
      %p391 = scmp.ne.s32.totalorder %s383, %s385
      %p392 = scmp.eq.s32.totalorder %s39, 1
      %p393 = por %p391, %p392
      %p394 = scmp.ne.s32.totalorder %s385, %s386
      %p395 = scmp.eq.s32.totalorder %s39, 0
      %p396 = por %p394, %p395
      %p397 = scmp.ne.s32.totalorder %s385, %s386
      %p398 = scmp.eq.s32.totalorder %s40, 1
      %p399 = por %p397, %p398
      %p401 = scmp.ne.s32.totalorder %s386, %s400
      %p402 = scmp.eq.s32.totalorder %s40, 0
      %p403 = por %p401, %p402
      %s405 = sadd.s32 %s404, 1
      %p408 = scmp.eq.s32.totalorder %s34, 1
      %p409 = scmp.ne.s32.totalorder %s404, %s406
      %p410 = scmp.eq.s32.totalorder %s34, 0
      %p411 = por %p409, %p410
      %p412 = scmp.ne.s32.totalorder %s404, %s406
      %p413 = scmp.eq.s32.totalorder %s39, 1
      %p414 = por %p412, %p413
      %p415 = scmp.ne.s32.totalorder %s406, %s407
      %p416 = scmp.eq.s32.totalorder %s39, 0
      %p417 = por %p415, %p416
      %p418 = scmp.ne.s32.totalorder %s406, %s407
      %p419 = scmp.eq.s32.totalorder %s40, 1
      %p420 = por %p418, %p419
      %p422 = scmp.ne.s32.totalorder %s407, %s421
      %p423 = scmp.eq.s32.totalorder %s40, 0
      %p424 = por %p422, %p423
      %s426 = sadd.s32 %s425, 1
      %p429 = scmp.eq.s32.totalorder %s34, 1
      %p430 = scmp.ne.s32.totalorder %s425, %s427
      %p431 = scmp.eq.s32.totalorder %s34, 0
      %p432 = por %p430, %p431
      %p433 = scmp.ne.s32.totalorder %s425, %s427
      %p434 = scmp.eq.s32.totalorder %s39, 1
      %p435 = por %p433, %p434
      %p436 = scmp.ne.s32.totalorder %s427, %s428
      %p437 = scmp.eq.s32.totalorder %s39, 0
      %p438 = por %p436, %p437
      %p439 = scmp.ne.s32.totalorder %s427, %s428
      %p440 = scmp.eq.s32.totalorder %s40, 1
      %p441 = por %p439, %p440
      %p443 = scmp.ne.s32.totalorder %s428, %s442
      %p444 = scmp.eq.s32.totalorder %s40, 0
      %p445 = por %p443, %p444
      %s447 = sadd.s32 %s446, 1
      %p450 = scmp.eq.s32.totalorder %s34, 1
      %p451 = scmp.ne.s32.totalorder %s446, %s448
      %p452 = scmp.eq.s32.totalorder %s34, 0
      %p453 = por %p451, %p452
      %p454 = scmp.ne.s32.totalorder %s446, %s448
      %p455 = scmp.eq.s32.totalorder %s39, 1
      %p456 = por %p454, %p455
      %p457 = scmp.ne.s32.totalorder %s448, %s449
      %p458 = scmp.eq.s32.totalorder %s39, 0
      %p459 = por %p457, %p458
      %p460 = scmp.ne.s32.totalorder %s448, %s449
      %p461 = scmp.eq.s32.totalorder %s40, 1
      %p462 = por %p460, %p461
      %p464 = scmp.ne.s32.totalorder %s449, %s463
      %p465 = scmp.eq.s32.totalorder %s40, 0
      %p466 = por %p464, %p465
      %s468 = sadd.s32 %s467, 1
      %p471 = scmp.eq.s32.totalorder %s34, 1
      %p472 = scmp.ne.s32.totalorder %s467, %s469
      %p473 = scmp.eq.s32.totalorder %s34, 0
      %p474 = por %p472, %p473
      %p475 = scmp.ne.s32.totalorder %s467, %s469
      %p476 = scmp.eq.s32.totalorder %s39, 1
      %p477 = por %p475, %p476
      %p478 = scmp.ne.s32.totalorder %s469, %s470
      %p479 = scmp.eq.s32.totalorder %s39, 0
      %p480 = por %p478, %p479
      %p481 = scmp.ne.s32.totalorder %s469, %s470
      %p482 = scmp.eq.s32.totalorder %s40, 1
      %p483 = por %p481, %p482
      %p485 = scmp.ne.s32.totalorder %s470, %s484
      %p486 = scmp.eq.s32.totalorder %s40, 0
      %p487 = por %p485, %p486
      %s489 = sadd.s32 %s488, 1
      %p492 = scmp.eq.s32.totalorder %s34, 1
      %p493 = scmp.ne.s32.totalorder %s488, %s490
      %p494 = scmp.eq.s32.totalorder %s34, 0
      %p495 = por %p493, %p494
      %p496 = scmp.ne.s32.totalorder %s488, %s490
      %p497 = scmp.eq.s32.totalorder %s39, 1
      %p498 = por %p496, %p497
      %p499 = scmp.ne.s32.totalorder %s490, %s491
      %p500 = scmp.eq.s32.totalorder %s39, 0
      %p501 = por %p499, %p500
      %p502 = scmp.ne.s32.totalorder %s490, %s491
      %p503 = scmp.eq.s32.totalorder %s40, 1
      %p504 = por %p502, %p503
      %p506 = scmp.ne.s32.totalorder %s491, %s505
      %p507 = scmp.eq.s32.totalorder %s40, 0
      %p508 = por %p506, %p507
      %s510 = sadd.s32 %s509, 1
      %p513 = scmp.eq.s32.totalorder %s34, 1
      %p514 = scmp.ne.s32.totalorder %s509, %s511
      %p515 = scmp.eq.s32.totalorder %s34, 0
      %p516 = por %p514, %p515
      %p517 = scmp.ne.s32.totalorder %s509, %s511
      %p518 = scmp.eq.s32.totalorder %s39, 1
      %p519 = por %p517, %p518
      %p520 = scmp.ne.s32.totalorder %s511, %s512
      %p521 = scmp.eq.s32.totalorder %s39, 0
      %p522 = por %p520, %p521
      %p523 = scmp.ne.s32.totalorder %s511, %s512
      %p524 = scmp.eq.s32.totalorder %s40, 1
      %p525 = por %p523, %p524
      %p527 = scmp.ne.s32.totalorder %s512, %s526
      %p528 = scmp.eq.s32.totalorder %s40, 0
      %p529 = por %p527, %p528
      %s530 = ssub.s32 %s34, %s41
      %p531 = scmp.eq.s32.totalorder %s530, 0
      %s533 = sadd.s32 %s532, 1
      %s534 = scalar_select %p531, %s532, %s533
      %p537 = pneg %p531
      %p538 = scmp.eq.s32.totalorder %s34, 1
      %p539 = por %p537, %p538
      %p540 = scmp.ne.s32.totalorder %s532, %s535
      %p541 = scmp.eq.s32.totalorder %s34, 0
      %p542 = por %p540, %p541
      %p543 = scmp.ne.s32.totalorder %s532, %s535
      %p544 = scmp.eq.s32.totalorder %s39, 1
      %p545 = por %p543, %p544
      %p546 = scmp.ne.s32.totalorder %s535, %s536
      %p547 = scmp.eq.s32.totalorder %s39, 0
      %p548 = por %p546, %p547
      %p549 = scmp.ne.s32.totalorder %s535, %s536
      %p550 = scmp.eq.s32.totalorder %s40, 1
      %p551 = por %p549, %p550
      %p553 = scmp.ne.s32.totalorder %s536, %s552
      %p554 = scmp.eq.s32.totalorder %s40, 0
      %p555 = por %p553, %p554
      %p556 = scmp.le.s32.totalorder 1, %s34
      %p557 = scmp.lt.s32.totalorder %s34, 3
      %p558 = pnand %p556, %p557
      %p559 = pneg %p558
      // Predicated region
      $region9: #{sagcn_forward.1} parent=5 // pred_check
        _
      $region10: #{sagcn_forward.1} parent=5 // pred_check_branch
        %561 = sbr.rel (%p558) target = $region12
      $region11: #{sagcn_forward.1} parent=5 // pred_region
        %s562 = ssub.s32 %s34, 1
        // Predicated region
        $region13: #{sagcn_forward.1} parent=11 // pred_check
          %p563 = pneg %p81
        $region14: #{sagcn_forward.1} parent=11 // pred_check_branch
          %565 = sbr.rel (%p563) target = $region16
        $region15: #{sagcn_forward.1} parent=11 // pred_region
          _
        $region16: #{sagcn_forward.1} parent=11 // pred_fallthru
          _
        // Predicated region
        $region17: #{sagcn_forward.1} parent=11 // pred_check
          %p566 = pneg %p102
        $region18: #{sagcn_forward.1} parent=11 // pred_check_branch
          %568 = sbr.rel (%p566) target = $region20
        $region19: #{sagcn_forward.1} parent=11 // pred_region
          _
        $region20: #{sagcn_forward.1} parent=11 // pred_fallthru
          _
        // Predicated region
        $region21: #{sagcn_forward.1} parent=11 // pred_check
          %p569 = pneg %p123
        $region22: #{sagcn_forward.1} parent=11 // pred_check_branch
          %571 = sbr.rel (%p569) target = $region24
        $region23: #{sagcn_forward.1} parent=11 // pred_region
          _
        $region24: #{sagcn_forward.1} parent=11 // pred_fallthru
          _
        // Predicated region
        $region25: #{sagcn_forward.1} parent=11 // pred_check
          %p572 = pneg %p144
        $region26: #{sagcn_forward.1} parent=11 // pred_check_branch
          %574 = sbr.rel (%p572) target = $region28
        $region27: #{sagcn_forward.1} parent=11 // pred_region
          _
        $region28: #{sagcn_forward.1} parent=11 // pred_fallthru
          _
        // Predicated region
        $region29: #{sagcn_forward.1} parent=11 // pred_check
          %p575 = pneg %p165
        $region30: #{sagcn_forward.1} parent=11 // pred_check_branch
          %577 = sbr.rel (%p575) target = $region32
        $region31: #{sagcn_forward.1} parent=11 // pred_region
          _
        $region32: #{sagcn_forward.1} parent=11 // pred_fallthru
          _
        // Predicated region
        $region33: #{sagcn_forward.1} parent=11 // pred_check
          %p578 = pneg %p186
        $region34: #{sagcn_forward.1} parent=11 // pred_check_branch
          %580 = sbr.rel (%p578) target = $region36
        $region35: #{sagcn_forward.1} parent=11 // pred_region
          _
        $region36: #{sagcn_forward.1} parent=11 // pred_fallthru
          _
        // Predicated region
        $region37: #{sagcn_forward.1} parent=11 // pred_check
          %p581 = pneg %p207
        $region38: #{sagcn_forward.1} parent=11 // pred_check_branch
          %583 = sbr.rel (%p581) target = $region40
        $region39: #{sagcn_forward.1} parent=11 // pred_region
          _
        $region40: #{sagcn_forward.1} parent=11 // pred_fallthru
          _
        // Predicated region
        $region41: #{sagcn_forward.1} parent=11 // pred_check
          %p584 = pneg %p228
        $region42: #{sagcn_forward.1} parent=11 // pred_check_branch
          %586 = sbr.rel (%p584) target = $region44
        $region43: #{sagcn_forward.1} parent=11 // pred_region
          _
        $region44: #{sagcn_forward.1} parent=11 // pred_fallthru
          _
        // Predicated region
        $region45: #{sagcn_forward.1} parent=11 // pred_check
          %p587 = pneg %p249
        $region46: #{sagcn_forward.1} parent=11 // pred_check_branch
          %589 = sbr.rel (%p587) target = $region48
        $region47: #{sagcn_forward.1} parent=11 // pred_region
          _
        $region48: #{sagcn_forward.1} parent=11 // pred_fallthru
          _
        // Predicated region
        $region49: #{sagcn_forward.1} parent=11 // pred_check
          %p590 = pneg %p270
        $region50: #{sagcn_forward.1} parent=11 // pred_check_branch
          %592 = sbr.rel (%p590) target = $region52
        $region51: #{sagcn_forward.1} parent=11 // pred_region
          _
        $region52: #{sagcn_forward.1} parent=11 // pred_fallthru
          _
        // Predicated region
        $region53: #{sagcn_forward.1} parent=11 // pred_check
          %p593 = pneg %p291
        $region54: #{sagcn_forward.1} parent=11 // pred_check_branch
          %595 = sbr.rel (%p593) target = $region56
        $region55: #{sagcn_forward.1} parent=11 // pred_region
          _
        $region56: #{sagcn_forward.1} parent=11 // pred_fallthru
          _
        // Predicated region
        $region57: #{sagcn_forward.1} parent=11 // pred_check
          %p596 = pneg %p312
        $region58: #{sagcn_forward.1} parent=11 // pred_check_branch
          %598 = sbr.rel (%p596) target = $region60
        $region59: #{sagcn_forward.1} parent=11 // pred_region
          _
        $region60: #{sagcn_forward.1} parent=11 // pred_fallthru
          _
        // Predicated region
        $region61: #{sagcn_forward.1} parent=11 // pred_check
          %p599 = pneg %p333
        $region62: #{sagcn_forward.1} parent=11 // pred_check_branch
          %601 = sbr.rel (%p599) target = $region64
        $region63: #{sagcn_forward.1} parent=11 // pred_region
          _
        $region64: #{sagcn_forward.1} parent=11 // pred_fallthru
          _
        // Predicated region
        $region65: #{sagcn_forward.1} parent=11 // pred_check
          %p602 = pneg %p354
        $region66: #{sagcn_forward.1} parent=11 // pred_check_branch
          %604 = sbr.rel (%p602) target = $region68
        $region67: #{sagcn_forward.1} parent=11 // pred_region
          _
        $region68: #{sagcn_forward.1} parent=11 // pred_fallthru
          _
        // Predicated region
        $region69: #{sagcn_forward.1} parent=11 // pred_check
          %p605 = pneg %p375
        $region70: #{sagcn_forward.1} parent=11 // pred_check_branch
          %607 = sbr.rel (%p605) target = $region72
        $region71: #{sagcn_forward.1} parent=11 // pred_region
          _
        $region72: #{sagcn_forward.1} parent=11 // pred_fallthru
          _
        // Predicated region
        $region73: #{sagcn_forward.1} parent=11 // pred_check
          %p608 = pneg %p396
        $region74: #{sagcn_forward.1} parent=11 // pred_check_branch
          %610 = sbr.rel (%p608) target = $region76
        $region75: #{sagcn_forward.1} parent=11 // pred_region
          _
        $region76: #{sagcn_forward.1} parent=11 // pred_fallthru
          _
        // Predicated region
        $region77: #{sagcn_forward.1} parent=11 // pred_check
          %p611 = pneg %p417
        $region78: #{sagcn_forward.1} parent=11 // pred_check_branch
          %613 = sbr.rel (%p611) target = $region80
        $region79: #{sagcn_forward.1} parent=11 // pred_region
          _
        $region80: #{sagcn_forward.1} parent=11 // pred_fallthru
          _
        // Predicated region
        $region81: #{sagcn_forward.1} parent=11 // pred_check
          %p614 = pneg %p438
        $region82: #{sagcn_forward.1} parent=11 // pred_check_branch
          %616 = sbr.rel (%p614) target = $region84
        $region83: #{sagcn_forward.1} parent=11 // pred_region
          _
        $region84: #{sagcn_forward.1} parent=11 // pred_fallthru
          _
        // Predicated region
        $region85: #{sagcn_forward.1} parent=11 // pred_check
          %p617 = pneg %p459
        $region86: #{sagcn_forward.1} parent=11 // pred_check_branch
          %619 = sbr.rel (%p617) target = $region88
        $region87: #{sagcn_forward.1} parent=11 // pred_region
          _
        $region88: #{sagcn_forward.1} parent=11 // pred_fallthru
          _
        // Predicated region
        $region89: #{sagcn_forward.1} parent=11 // pred_check
          %p620 = pneg %p480
        $region90: #{sagcn_forward.1} parent=11 // pred_check_branch
          %622 = sbr.rel (%p620) target = $region92
        $region91: #{sagcn_forward.1} parent=11 // pred_region
          _
        $region92: #{sagcn_forward.1} parent=11 // pred_fallthru
          _
        // Predicated region
        $region93: #{sagcn_forward.1} parent=11 // pred_check
          %p623 = pneg %p501
        $region94: #{sagcn_forward.1} parent=11 // pred_check_branch
          %625 = sbr.rel (%p623) target = $region96
        $region95: #{sagcn_forward.1} parent=11 // pred_region
          _
        $region96: #{sagcn_forward.1} parent=11 // pred_fallthru
          _
        // Predicated region
        $region97: #{sagcn_forward.1} parent=11 // pred_check
          %p626 = pneg %p522
        $region98: #{sagcn_forward.1} parent=11 // pred_check_branch
          %628 = sbr.rel (%p626) target = $region100
        $region99: #{sagcn_forward.1} parent=11 // pred_region
          _
        $region100: #{sagcn_forward.1} parent=11 // pred_fallthru
          _
      $region12: #{sagcn_forward.1} parent=5 // pred_fallthru
        _
      %p629 = scmp.lt.s32.totalorder %s34, 2
      // Predicated region
      $region101: #{sagcn_forward.1} parent=5 // pred_check
        %p630 = pneg %p629
      $region102: #{sagcn_forward.1} parent=5 // pred_check_branch
        %632 = sbr.rel (%p630) target = $region104
      $region103: #{sagcn_forward.1} parent=5 // pred_region
        // Predicated region
        $region105: #{sagcn_forward.1} parent=103 // pred_check
          %p633 = pneg %p54
        $region106: #{sagcn_forward.1} parent=103 // pred_check_branch
          %635 = sbr.rel (%p633) target = $region108
        $region107: #{sagcn_forward.1} parent=103 // pred_region
          %p636 = scmp.lt.s32.totalorder %s34, 1
          %s637 = scalar_select %p636, %s34, 1
          %s638 = smul.addr %s637, 16
          %s639 = smul.addr %s638, 8
          %s640 = scalar_lea.vmem %s0, %s639
        $region108: #{sagcn_forward.1} parent=103 // pred_fallthru
          _
      $region104: #{sagcn_forward.1} parent=5 // pred_fallthru
        _
      %p641 = scmp.le.s32.totalorder 1, %s34
      %p642 = scmp.lt.s32.totalorder %s34, 3
      %p643 = pnand %p641, %p642
      %p644 = pneg %p643
      // Predicated region
      $region109: #{sagcn_forward.1} parent=5 // pred_check
        _
      $region110: #{sagcn_forward.1} parent=5 // pred_check_branch
        %646 = sbr.rel (%p643) target = $region112
      $region111: #{sagcn_forward.1} parent=5 // pred_region
        %s647 = ssub.s32 %s34, 1
        %p648 = scmp.lt.s32.totalorder %s39, 1
        %s649 = scalar_select %p648, %s39, 1
        %s650 = smul.addr %s649, 16
        %s651 = smul.addr %s650, 8
        %s652 = scalar_lea.vmem %s0, %s651
        %p653 = pneg %p60
        %p654 = pneg %p57
        %p655 = pneg %p81
        %p656 = pneg %p78
        %p657 = pneg %p102
        %p658 = pneg %p99
        %p659 = pneg %p123
        %p660 = pneg %p120
        %p661 = pneg %p144
        %p662 = pneg %p141
        %p663 = pneg %p165
        %p664 = pneg %p162
        %p665 = pneg %p186
        %p666 = pneg %p183
        %p667 = pneg %p207
        %p668 = pneg %p204
        %p669 = pneg %p228
        %p670 = pneg %p225
        %p671 = pneg %p249
        %p672 = pneg %p246
        %p673 = pneg %p270
        %p674 = pneg %p267
        %p675 = pneg %p291
        %p676 = pneg %p288
        %p677 = pneg %p312
        %p678 = pneg %p309
        %p679 = pneg %p333
        %p680 = pneg %p330
        %p681 = pneg %p354
        %p682 = pneg %p351
        %p683 = pneg %p375
        %p684 = pneg %p372
        %p685 = pneg %p396
        %p686 = pneg %p393
        %p687 = pneg %p417
        %p688 = pneg %p414
        %p689 = pneg %p438
        %p690 = pneg %p435
        %p691 = pneg %p459
        %p692 = pneg %p456
        %p693 = pneg %p480
        %p694 = pneg %p477
        %p695 = pneg %p501
        %p696 = pneg %p498
        %p697 = pneg %p522
        %p698 = pneg %p519
        %p699 = pneg %p548
        %p700 = pneg %p545
        %s701 = sand.u32 %s535, 1
        %s702 = scalar_lea.sflag [#allocation4], %s701
        %s703 = sand.u32 %s535, 1
        %s704 = scalar_lea.vmem [#allocation3], %s703
        %p705 = scmp.lt.s32.totalorder %s39, 1
        %s706 = scalar_select %p705, %s39, 1
        %s707 = smul.addr %s706, 16
        %s708 = smul.addr %s707, 8
        %s709 = scalar_lea.vmem %s0, %s708
        %v711 = vld [vmem:[%s709] sm:$0xff]
        %v712 = vld [vmem:[%s709 + $0x8] sm:$0xff]
        %v713 = vld [vmem:[%s709 + $0x10] sm:$0xff]
        %v714 = vld [vmem:[%s709 + $0x18] sm:$0xff]
        %v715 = vld [vmem:[%s709 + $0x20] sm:$0xff]
        %v716 = vld [vmem:[%s709 + $0x28] sm:$0xff]
        %v717 = vld [vmem:[%s709 + $0x30] sm:$0xff]
        %v718 = vld [vmem:[%s709 + $0x38] sm:$0xff]
        %v719 = vld [vmem:[%s709 + $0x40] sm:$0xff]
        %v720 = vld [vmem:[%s709 + $0x48] sm:$0xff]
        %v721 = vld [vmem:[%s709 + $0x50] sm:$0xff]
        %v722 = vld [vmem:[%s709 + $0x58] sm:$0xff]
        %v723 = vld [vmem:[%s709 + $0x60] sm:$0xff]
        %v724 = vld [vmem:[%s709 + $0x68] sm:$0xff]
        %v725 = vld [vmem:[%s709 + $0x70] sm:$0xff]
        %v726 = vld [vmem:[%s709 + $0x78] sm:$0xff]
        %v727 = vld [vmem:[%s1] sm:$0xff]
        %v728 = vld [vmem:[%s1 + $0x8] sm:$0xff]
        %v729 = vld [vmem:[%s1 + $0x10] sm:$0xff]
        %v730 = vld [vmem:[%s1 + $0x18] sm:$0xff]
        %v731 = vld [vmem:[%s1 + $0x20] sm:$0xff]
        %v732 = vld [vmem:[%s1 + $0x28] sm:$0xff]
        %v733 = vld [vmem:[%s1 + $0x30] sm:$0xff]
        %v734 = vld [vmem:[%s1 + $0x38] sm:$0xff]
        %v735 = vld [vmem:[%s1 + $0x40] sm:$0xff]
        %v736 = vld [vmem:[%s1 + $0x48] sm:$0xff]
        %v737 = vld [vmem:[%s1 + $0x50] sm:$0xff]
        %v738 = vld [vmem:[%s1 + $0x58] sm:$0xff]
        %v739 = vld [vmem:[%s1 + $0x60] sm:$0xff]
        %v740 = vld [vmem:[%s1 + $0x68] sm:$0xff]
        %v741 = vld [vmem:[%s1 + $0x70] sm:$0xff]
        %v742 = vld [vmem:[%s1 + $0x78] sm:$0xff]
        %v743 = vmul.f32 %v711, %v727
        %v744 = vmul.f32 %v712, %v728
        %v745 = vmul.f32 %v713, %v729
        %v746 = vmul.f32 %v714, %v730
        %v747 = vmul.f32 %v715, %v731
        %v748 = vmul.f32 %v716, %v732
        %v749 = vmul.f32 %v717, %v733
        %v750 = vmul.f32 %v718, %v734
        %v751 = vmul.f32 %v719, %v735
        %v752 = vmul.f32 %v720, %v736
        %v753 = vmul.f32 %v721, %v737
        %v754 = vmul.f32 %v722, %v738
        %v755 = vmul.f32 %v723, %v739
        %v756 = vmul.f32 %v724, %v740
        %v757 = vmul.f32 %v725, %v741
        %v758 = vmul.f32 %v726, %v742
        %v759 = vpack.c.bf16 %v744, %v743
        %v760 = vpack.c.bf16 %v746, %v745
        %v761 = vpack.c.bf16 %v748, %v747
        %v762 = vpack.c.bf16 %v750, %v749
        %v763 = vpack.c.bf16 %v752, %v751
        %v764 = vpack.c.bf16 %v754, %v753
        %v765 = vpack.c.bf16 %v756, %v755
        %v766 = vpack.c.bf16 %v758, %v757
        %v767 = vld [vmem:[%s4] sm:$0x3]
        %v768 = vld [vmem:[%s5] sm:$0xff]
        %v769 = vld [vmem:[%s5 + $0x8] sm:$0xff]
        %v770 = vld [vmem:[%s5 + $0x10] sm:$0xff]
        %v771 = vld [vmem:[%s5 + $0x18] sm:$0xff]
        %v772 = vld [vmem:[%s5 + $0x20] sm:$0xff]
        %v773 = vld [vmem:[%s5 + $0x28] sm:$0xff]
        %v774 = vld [vmem:[%s5 + $0x30] sm:$0xff]
        %v775 = vld [vmem:[%s5 + $0x38] sm:$0xff]
        %v776 = vld [vmem:[%s5 + $0x40] sm:$0xff]
        %v777 = vld [vmem:[%s5 + $0x48] sm:$0xff]
        %v778 = vld [vmem:[%s5 + $0x50] sm:$0xff]
        %v779 = vld [vmem:[%s5 + $0x58] sm:$0xff]
        %v780 = vld [vmem:[%s5 + $0x60] sm:$0xff]
        %v781 = vld [vmem:[%s5 + $0x68] sm:$0xff]
        %v782 = vld [vmem:[%s5 + $0x70] sm:$0xff]
        %v783 = vld [vmem:[%s5 + $0x78] sm:$0xff]
        %vm784 = vcmask 31744
        %v786 = vsel %vm784, %v759, 0
        %v789 = vsel %vm784, %v760, 0
        %v792 = vsel %vm784, %v761, 0
        %v795 = vsel %vm784, %v762, 0
        %v798 = vsel %vm784, %v763, 0
        %v801 = vsel %vm784, %v764, 0
        %v804 = vsel %vm784, %v765, 0
        %v807 = vsel %vm784, %v766, 0
        %vm809 = vcmask 1041408
        %v811 = vsel %vm809, %v767, 0
        %813 = vmatprep.subr.bf16.mxu0 0
        %814 = vmatpush1.bf16.msra.mxu0 %v811
        %815 = vmatprep.subr.bf16.mxu0 0
        %816 = vmatpush1.bf16.msra.mxu0 0
        %817 = vmatprep.subr.bf16.mxu0 0
        %818 = vmatpush1.bf16.msra.mxu0 0
        %819 = vmatprep.subr.bf16.mxu0 0
        %820 = vmatpush1.bf16.msra.mxu0 0
        %821 = vmatprep.subr.bf16.mxu0 0
        %822 = vmatpush1.bf16.msra.mxu0 0
        %823 = vmatprep.subr.bf16.mxu0 0
        %824 = vmatpush1.bf16.msra.mxu0 0
        %825 = vmatprep.subr.bf16.mxu0 0
        %826 = vmatpush1.bf16.msra.mxu0 0
        %827 = vmatprep.subr.bf16.mxu0 0
        %828 = vmatpush1.bf16.msra.mxu0 0
        %829 = vmatprep.subr.bf16.mxu0 0
        %830 = vmatpush1.bf16.msra.mxu0 0
        %831 = vmatprep.subr.bf16.mxu0 0
        %832 = vmatpush1.bf16.msra.mxu0 0
        %833 = vmatprep.subr.bf16.mxu0 0
        %834 = vmatpush1.bf16.msra.mxu0 0
        %835 = vmatprep.subr.bf16.mxu0 0
        %836 = vmatpush1.bf16.msra.mxu0 0
        %837 = vmatprep.subr.bf16.mxu0 0
        %838 = vmatpush1.bf16.msra.mxu0 0
        %839 = vmatprep.subr.bf16.mxu0 0
        %840 = vmatpush1.bf16.msra.mxu0 0
        %841 = vmatprep.subr.bf16.mxu0 0
        %842 = vmatpush1.bf16.msra.mxu0 0
        %843 = vmatprep.subr.bf16.mxu0 0
        %844 = vmatpush1.bf16.msra.mxu0 0
        %845 = vmatprep.mubr.bf16.mxu0 0
        %846 = vmatmul.mubr.bf16.gmra.mrb[0].mxu0 %v786
        %v847 = vpop.f32.mrb[0].mxu0
        %v848 = vadd.f32 %v768, %v847
        %v849 = vpop.f32.mrb[0].mxu0
        %v850 = vpop.f32.mrb[0].mxu0
        %v851 = vadd.f32 %v769, %v850
        %v852 = vpop.f32.mrb[0].mxu0
        %853 = vmatprep.mubr.bf16.mxu0 0
        %854 = vmatmul.mubr.bf16.gmra.mrb[0].mxu0 %v789
        %v855 = vpop.f32.mrb[0].mxu0
        %v856 = vadd.f32 %v770, %v855
        %v857 = vpop.f32.mrb[0].mxu0
        %v858 = vpop.f32.mrb[0].mxu0
        %v859 = vadd.f32 %v771, %v858
        %v860 = vpop.f32.mrb[0].mxu0
        %861 = vmatprep.mubr.bf16.mxu0 0
        %862 = vmatmul.mubr.bf16.gmra.mrb[0].mxu0 %v792
        %v863 = vpop.f32.mrb[0].mxu0
        %v864 = vadd.f32 %v772, %v863
        %v865 = vpop.f32.mrb[0].mxu0
        %v866 = vpop.f32.mrb[0].mxu0
        %v867 = vadd.f32 %v773, %v866
        %v868 = vpop.f32.mrb[0].mxu0
        %869 = vmatprep.mubr.bf16.mxu0 0
        %870 = vmatmul.mubr.bf16.gmra.mrb[0].mxu0 %v795
        %v871 = vpop.f32.mrb[0].mxu0
        %v872 = vadd.f32 %v774, %v871
        %v873 = vpop.f32.mrb[0].mxu0
        %v874 = vpop.f32.mrb[0].mxu0
        %v875 = vadd.f32 %v775, %v874
        %v876 = vpop.f32.mrb[0].mxu0
        %877 = vmatprep.mubr.bf16.mxu0 0
        %878 = vmatmul.mubr.bf16.gmra.mrb[0].mxu0 %v798
        %v879 = vpop.f32.mrb[0].mxu0
        %v880 = vadd.f32 %v776, %v879
        %v881 = vpop.f32.mrb[0].mxu0
        %v882 = vpop.f32.mrb[0].mxu0
        %v883 = vadd.f32 %v777, %v882
        %v884 = vpop.f32.mrb[0].mxu0
        %885 = vmatprep.mubr.bf16.mxu0 0
        %886 = vmatmul.mubr.bf16.gmra.mrb[0].mxu0 %v801
        %v887 = vpop.f32.mrb[0].mxu0
        %v888 = vadd.f32 %v778, %v887
        %v889 = vpop.f32.mrb[0].mxu0
        %v890 = vpop.f32.mrb[0].mxu0
        %v891 = vadd.f32 %v779, %v890
        %v892 = vpop.f32.mrb[0].mxu0
        %893 = vmatprep.mubr.bf16.mxu0 0
        %894 = vmatmul.mubr.bf16.gmra.mrb[0].mxu0 %v804
        %v895 = vpop.f32.mrb[0].mxu0
        %v896 = vadd.f32 %v780, %v895
        %v897 = vpop.f32.mrb[0].mxu0
        %v898 = vpop.f32.mrb[0].mxu0
        %v899 = vadd.f32 %v781, %v898
        %v900 = vpop.f32.mrb[0].mxu0
        %901 = vmatprep.mubr.bf16.mxu0 0
        %902 = vmatmul.mubr.bf16.gmra.mrb[0].mxu0 %v807
        %v903 = vpop.f32.mrb[0].mxu0
        %v904 = vadd.f32 %v782, %v903
        %v905 = vpop.f32.mrb[0].mxu0
        %v906 = vpop.f32.mrb[0].mxu0
        %v907 = vadd.f32 %v783, %v906
        %v908 = vpop.f32.mrb[0].mxu0
        %909 = vdwg.mxu0
        %v910 = vld [vmem:[%s2] sm:$0xf]
        %v911 = vld [vmem:[%s2 + $0x4] sm:$0xf]
        %v912 = vld [vmem:[%s2 + $0x8] sm:$0xf]
        %v913 = vld [vmem:[%s2 + $0xc] sm:$0xf]
        %v914 = vld [vmem:[%s2 + $0x10] sm:$0xf]
        %v915 = vld [vmem:[%s2 + $0x14] sm:$0xf]
        %v916 = vld [vmem:[%s2 + $0x18] sm:$0xf]
        %v917 = vld [vmem:[%s2 + $0x1c] sm:$0xf]
        %v918 = vld [vmem:[%s2 + $0x20] sm:$0xf]
        %v919 = vld [vmem:[%s2 + $0x24] sm:$0xf]
        %v920 = vld [vmem:[%s2 + $0x28] sm:$0xf]
        %v921 = vld [vmem:[%s2 + $0x2c] sm:$0xf]
        %v922 = vld [vmem:[%s2 + $0x30] sm:$0xf]
        %v923 = vld [vmem:[%s2 + $0x34] sm:$0xf]
        %v924 = vld [vmem:[%s2 + $0x38] sm:$0xf]
        %v925 = vld [vmem:[%s2 + $0x3c] sm:$0xf]
        %v926 = vpack.c.bf16 %v851, %v848
        %v927 = vpack.c.bf16 %v859, %v856
        %v928 = vpack.c.bf16 %v867, %v864
        %v929 = vpack.c.bf16 %v875, %v872
        %v930 = vpack.c.bf16 %v883, %v880
        %v931 = vpack.c.bf16 %v891, %v888
        %v932 = vpack.c.bf16 %v899, %v896
        %v933 = vpack.c.bf16 %v907, %v904
        %v950 = vunpack.c.l.b16 %v910
        %v951 = vunpack.c.l.b16 %v911
        %v952 = vunpack.c.l.b16 %v912
        %v953 = vunpack.c.l.b16 %v913
        %v954 = vunpack.c.l.b16 %v914
        %v955 = vunpack.c.l.b16 %v915
        %v956 = vunpack.c.l.b16 %v916
        %v957 = vunpack.c.l.b16 %v917
        %v958 = vunpack.c.l.b16 %v918
        %v959 = vunpack.c.l.b16 %v919
        %v960 = vunpack.c.l.b16 %v920
        %v961 = vunpack.c.l.b16 %v921
        %v962 = vunpack.c.l.b16 %v922
        %v963 = vunpack.c.l.b16 %v923
        %v964 = vunpack.c.l.b16 %v924
        %v965 = vunpack.c.l.b16 %v925
        %v966 = vpack.c.b16 %v951, %v950
        %v967 = vpack.c.b16 %v953, %v952
        %v968 = vpack.c.b16 %v955, %v954
        %v969 = vpack.c.b16 %v957, %v956
        %v970 = vpack.c.b16 %v959, %v958
        %v971 = vpack.c.b16 %v961, %v960
        %v972 = vpack.c.b16 %v963, %v962
        %v973 = vpack.c.b16 %v965, %v964
        %982 = vmatprep.subr.bf16.mxu0 0
        %983 = vmatpush1.bf16.msra.mxu0 %v926
        %984 = vmatprep.subr.bf16.mxu0 0
        %985 = vmatpush1.bf16.msra.mxu0 %v927
        %986 = vmatprep.subr.bf16.mxu0 0
        %987 = vmatpush1.bf16.msra.mxu0 %v928
        %988 = vmatprep.subr.bf16.mxu0 0
        %989 = vmatpush1.bf16.msra.mxu0 %v929
        %990 = vmatprep.subr.bf16.mxu0 0
        %991 = vmatpush1.bf16.msra.mxu0 %v930
        %992 = vmatprep.subr.bf16.mxu0 0
        %993 = vmatpush1.bf16.msra.mxu0 %v931
        %994 = vmatprep.subr.bf16.mxu0 0
        %995 = vmatpush1.bf16.msra.mxu0 %v932
        %996 = vmatprep.subr.bf16.mxu0 0
        %997 = vmatpush1.bf16.msra.mxu0 %v933
        %998 = vmatprep.subr.bf16.mxu0 0
        %999 = vmatpush1.bf16.msra.mxu0 0
        %1000 = vmatprep.subr.bf16.mxu0 0
        %1001 = vmatpush1.bf16.msra.mxu0 0
        %1002 = vmatprep.subr.bf16.mxu0 0
        %1003 = vmatpush1.bf16.msra.mxu0 0
        %1004 = vmatprep.subr.bf16.mxu0 0
        %1005 = vmatpush1.bf16.msra.mxu0 0
        %1006 = vmatprep.subr.bf16.mxu0 0
        %1007 = vmatpush1.bf16.msra.mxu0 0
        %1008 = vmatprep.subr.bf16.mxu0 0
        %1009 = vmatpush1.bf16.msra.mxu0 0
        %1010 = vmatprep.subr.bf16.mxu0 0
        %1011 = vmatpush1.bf16.msra.mxu0 0
        %1012 = vmatprep.subr.bf16.mxu0 0
        %1013 = vmatpush1.bf16.msra.mxu0 0
        %1014 = vmatprep.mubr.bf16.mxu0 0
        %1015 = vmatmul.mubr.bf16.gmra.mrb[0].mxu0 %v966
        %v1016 = vpop.f32.mrb[0].mxu0
        %v1017 = vadd.f32 0.0, %v1016
        %v1018 = vpop.f32.mrb[0].mxu0
        %v1019 = vpop.f32.mrb[0].mxu0
        %v1020 = vadd.f32 0.0, %v1019
        %v1021 = vpop.f32.mrb[0].mxu0
        %1022 = vmatprep.mubr.bf16.mxu0 0
        %1023 = vmatmul.mubr.bf16.gmra.mrb[0].mxu0 %v967
        %v1024 = vpop.f32.mrb[0].mxu0
        %v1025 = vadd.f32 0.0, %v1024
        %v1026 = vpop.f32.mrb[0].mxu0
        %v1027 = vpop.f32.mrb[0].mxu0
        %v1028 = vadd.f32 0.0, %v1027
        %v1029 = vpop.f32.mrb[0].mxu0
        %1030 = vmatprep.mubr.bf16.mxu0 0
        %1031 = vmatmul.mubr.bf16.gmra.mrb[0].mxu0 %v968
        %v1032 = vpop.f32.mrb[0].mxu0
        %v1033 = vadd.f32 0.0, %v1032
        %v1034 = vpop.f32.mrb[0].mxu0
        %v1035 = vpop.f32.mrb[0].mxu0
        %v1036 = vadd.f32 0.0, %v1035
        %v1037 = vpop.f32.mrb[0].mxu0
        %1038 = vmatprep.mubr.bf16.mxu0 0
        %1039 = vmatmul.mubr.bf16.gmra.mrb[0].mxu0 %v969
        %v1040 = vpop.f32.mrb[0].mxu0
        %v1041 = vadd.f32 0.0, %v1040
        %v1042 = vpop.f32.mrb[0].mxu0
        %v1043 = vpop.f32.mrb[0].mxu0
        %v1044 = vadd.f32 0.0, %v1043
        %v1045 = vpop.f32.mrb[0].mxu0
        %1046 = vmatprep.mubr.bf16.mxu0 0
        %1047 = vmatmul.mubr.bf16.gmra.mrb[0].mxu0 %v970
        %v1048 = vpop.f32.mrb[0].mxu0
        %v1049 = vadd.f32 0.0, %v1048
        %v1050 = vpop.f32.mrb[0].mxu0
        %v1051 = vpop.f32.mrb[0].mxu0
        %v1052 = vadd.f32 0.0, %v1051
        %v1053 = vpop.f32.mrb[0].mxu0
        %1054 = vmatprep.mubr.bf16.mxu0 0
        %1055 = vmatmul.mubr.bf16.gmra.mrb[0].mxu0 %v971
        %v1056 = vpop.f32.mrb[0].mxu0
        %v1057 = vadd.f32 0.0, %v1056
        %v1058 = vpop.f32.mrb[0].mxu0
        %v1059 = vpop.f32.mrb[0].mxu0
        %v1060 = vadd.f32 0.0, %v1059
        %v1061 = vpop.f32.mrb[0].mxu0
        %1062 = vmatprep.mubr.bf16.mxu0 0
        %1063 = vmatmul.mubr.bf16.gmra.mrb[0].mxu0 %v972
        %v1064 = vpop.f32.mrb[0].mxu0
        %v1065 = vadd.f32 0.0, %v1064
        %v1066 = vpop.f32.mrb[0].mxu0
        %v1067 = vpop.f32.mrb[0].mxu0
        %v1068 = vadd.f32 0.0, %v1067
        %v1069 = vpop.f32.mrb[0].mxu0
        %1070 = vmatprep.mubr.bf16.mxu0 0
        %1071 = vmatmul.mubr.bf16.gmra.mrb[0].mxu0 %v973
        %v1072 = vpop.f32.mrb[0].mxu0
        %v1073 = vadd.f32 0.0, %v1072
        %v1074 = vpop.f32.mrb[0].mxu0
        %v1075 = vpop.f32.mrb[0].mxu0
        %v1076 = vadd.f32 0.0, %v1075
        %v1077 = vpop.f32.mrb[0].mxu0
        %1078 = vdwg.mxu0
        %v1079 = vpack.c.bf16 %v1020, %v1017
        %v1080 = vpack.c.bf16 %v1028, %v1025
        %v1081 = vpack.c.bf16 %v1036, %v1033
        %v1082 = vpack.c.bf16 %v1044, %v1041
        %v1083 = vpack.c.bf16 %v1052, %v1049
        %v1084 = vpack.c.bf16 %v1060, %v1057
        %v1085 = vpack.c.bf16 %v1068, %v1065
        %v1086 = vpack.c.bf16 %v1076, %v1073
        %v1087 = vld [vmem:[%s6] sm:$0xf]
        %v1088 = vld [vmem:[%s6 + $0x4] sm:$0xf]
        %v1089 = vld [vmem:[%s6 + $0x8] sm:$0xf]
        %v1090 = vld [vmem:[%s6 + $0xc] sm:$0xf]
        %v1091 = vld [vmem:[%s7] sm:$0x1]
        %v1093 = vlaneseq
        %v1094 = vshrl.u32 %v1093, 7
        %v1095 = vsub.s32 0, %v1094
        %v1096 = vrot.slane %v1091, %v1095
        %v1102 = vunpack.c.l.b16 %v1087
        %v1103 = vunpack.c.l.b16 %v1088
        %v1104 = vunpack.c.l.b16 %v1089
        %v1105 = vunpack.c.l.b16 %v1090
        %v1106 = vpack.c.b16 %v1103, %v1102
        %v1107 = vpack.c.b16 %v1105, %v1104
        %vm1110 = vcmask 261120
        %v1112 = vsel %vm1110, %v1079, 0
        %v1115 = vsel %vm1110, %v1080, 0
        %v1118 = vsel %vm1110, %v1081, 0
        %v1121 = vsel %vm1110, %v1082, 0
        %v1124 = vsel %vm1110, %v1083, 0
        %v1127 = vsel %vm1110, %v1084, 0
        %v1130 = vsel %vm1110, %v1085, 0
        %v1133 = vsel %vm1110, %v1086, 0
        %1135 = vmatprep.subr.bf16.mxu0 0
        %1136 = vmatpush1.bf16.msra.mxu0 %v1106
        %1137 = vmatprep.subr.bf16.mxu0 0
        %1138 = vmatpush1.bf16.msra.mxu0 %v1107
        %1139 = vmatprep.subr.bf16.mxu0 0
        %1140 = vmatpush1.bf16.msra.mxu0 0
        %1141 = vmatprep.subr.bf16.mxu0 0
        %1142 = vmatpush1.bf16.msra.mxu0 0
        %1143 = vmatprep.subr.bf16.mxu0 0
        %1144 = vmatpush1.bf16.msra.mxu0 0
        %1145 = vmatprep.subr.bf16.mxu0 0
        %1146 = vmatpush1.bf16.msra.mxu0 0
        %1147 = vmatprep.subr.bf16.mxu0 0
        %1148 = vmatpush1.bf16.msra.mxu0 0
        %1149 = vmatprep.subr.bf16.mxu0 0
        %1150 = vmatpush1.bf16.msra.mxu0 0
        %1151 = vmatprep.subr.bf16.mxu0 0
        %1152 = vmatpush1.bf16.msra.mxu0 0
        %1153 = vmatprep.subr.bf16.mxu0 0
        %1154 = vmatpush1.bf16.msra.mxu0 0
        %1155 = vmatprep.subr.bf16.mxu0 0
        %1156 = vmatpush1.bf16.msra.mxu0 0
        %1157 = vmatprep.subr.bf16.mxu0 0
        %1158 = vmatpush1.bf16.msra.mxu0 0
        %1159 = vmatprep.subr.bf16.mxu0 0
        %1160 = vmatpush1.bf16.msra.mxu0 0
        %1161 = vmatprep.subr.bf16.mxu0 0
        %1162 = vmatpush1.bf16.msra.mxu0 0
        %1163 = vmatprep.subr.bf16.mxu0 0
        %1164 = vmatpush1.bf16.msra.mxu0 0
        %1165 = vmatprep.subr.bf16.mxu0 0
        %1166 = vmatpush1.bf16.msra.mxu0 0
        %1167 = vmatprep.mubr.bf16.mxu0 0
        %1168 = vmatmul.mubr.bf16.gmra.mrb[0].mxu0 %v1112
        %v1169 = vpop.f32.mrb[0].mxu0
        %v1170 = vadd.f32 %v1096, %v1169
        %v1171 = vpop.f32.mrb[0].mxu0
        %v1172 = vpop.f32.mrb[0].mxu0
        %v1173 = vadd.f32 %v1096, %v1172
        %v1174 = vpop.f32.mrb[0].mxu0
        %1175 = vmatprep.mubr.bf16.mxu0 0
        %1176 = vmatmul.mubr.bf16.gmra.mrb[0].mxu0 %v1115
        %v1177 = vpop.f32.mrb[0].mxu0
        %v1178 = vadd.f32 %v1096, %v1177
        %v1179 = vpop.f32.mrb[0].mxu0
        %v1180 = vpop.f32.mrb[0].mxu0
        %v1181 = vadd.f32 %v1096, %v1180
        %v1182 = vpop.f32.mrb[0].mxu0
        %1183 = vmatprep.mubr.bf16.mxu0 0
        %1184 = vmatmul.mubr.bf16.gmra.mrb[0].mxu0 %v1118
        %v1185 = vpop.f32.mrb[0].mxu0
        %v1186 = vadd.f32 %v1096, %v1185
        %v1187 = vpop.f32.mrb[0].mxu0
        %v1188 = vpop.f32.mrb[0].mxu0
        %v1189 = vadd.f32 %v1096, %v1188
        %v1190 = vpop.f32.mrb[0].mxu0
        %1191 = vmatprep.mubr.bf16.mxu0 0
        %1192 = vmatmul.mubr.bf16.gmra.mrb[0].mxu0 %v1121
        %v1193 = vpop.f32.mrb[0].mxu0
        %v1194 = vadd.f32 %v1096, %v1193
        %v1195 = vpop.f32.mrb[0].mxu0
        %v1196 = vpop.f32.mrb[0].mxu0
        %v1197 = vadd.f32 %v1096, %v1196
        %v1198 = vpop.f32.mrb[0].mxu0
        %1199 = vmatprep.mubr.bf16.mxu0 0
        %1200 = vmatmul.mubr.bf16.gmra.mrb[0].mxu0 %v1124
        %v1201 = vpop.f32.mrb[0].mxu0
        %v1202 = vadd.f32 %v1096, %v1201
        %v1203 = vpop.f32.mrb[0].mxu0
        %v1204 = vpop.f32.mrb[0].mxu0
        %v1205 = vadd.f32 %v1096, %v1204
        %v1206 = vpop.f32.mrb[0].mxu0
        %1207 = vmatprep.mubr.bf16.mxu0 0
        %1208 = vmatmul.mubr.bf16.gmra.mrb[0].mxu0 %v1127
        %v1209 = vpop.f32.mrb[0].mxu0
        %v1210 = vadd.f32 %v1096, %v1209
        %v1211 = vpop.f32.mrb[0].mxu0
        %v1212 = vpop.f32.mrb[0].mxu0
        %v1213 = vadd.f32 %v1096, %v1212
        %v1214 = vpop.f32.mrb[0].mxu0
        %1215 = vmatprep.mubr.bf16.mxu0 0
        %1216 = vmatmul.mubr.bf16.gmra.mrb[0].mxu0 %v1130
        %v1217 = vpop.f32.mrb[0].mxu0
        %v1218 = vadd.f32 %v1096, %v1217
        %v1219 = vpop.f32.mrb[0].mxu0
        %v1220 = vpop.f32.mrb[0].mxu0
        %v1221 = vadd.f32 %v1096, %v1220
        %v1222 = vpop.f32.mrb[0].mxu0
        %1223 = vmatprep.mubr.bf16.mxu0 0
        %1224 = vmatmul.mubr.bf16.gmra.mrb[0].mxu0 %v1133
        %v1225 = vpop.f32.mrb[0].mxu0
        %v1226 = vadd.f32 %v1096, %v1225
        %v1227 = vpop.f32.mrb[0].mxu0
        %v1228 = vpop.f32.mrb[0].mxu0
        %v1229 = vadd.f32 %v1096, %v1228
        %v1230 = vpop.f32.mrb[0].mxu0
        %1231 = vdwg.mxu0
        %vm1232 = vcmp.gt.f32.partialorder %v1170, 0.0
        %vm1233 = vcmp.gt.f32.partialorder %v1173, 0.0
        %vm1234 = vcmp.gt.f32.partialorder %v1178, 0.0
        %vm1235 = vcmp.gt.f32.partialorder %v1181, 0.0
        %vm1236 = vcmp.gt.f32.partialorder %v1186, 0.0
        %vm1237 = vcmp.gt.f32.partialorder %v1189, 0.0
        %vm1238 = vcmp.gt.f32.partialorder %v1194, 0.0
        %vm1239 = vcmp.gt.f32.partialorder %v1197, 0.0
        %vm1240 = vcmp.gt.f32.partialorder %v1202, 0.0
        %vm1241 = vcmp.gt.f32.partialorder %v1205, 0.0
        %vm1242 = vcmp.gt.f32.partialorder %v1210, 0.0
        %vm1243 = vcmp.gt.f32.partialorder %v1213, 0.0
        %vm1244 = vcmp.gt.f32.partialorder %v1218, 0.0
        %vm1245 = vcmp.gt.f32.partialorder %v1221, 0.0
        %vm1246 = vcmp.gt.f32.partialorder %v1226, 0.0
        %vm1247 = vcmp.gt.f32.partialorder %v1229, 0.0
        %v1248 = vmul.f32 %v1170, 0.01
        %v1249 = vmul.f32 %v1173, 0.01
        %v1250 = vmul.f32 %v1178, 0.01
        %v1251 = vmul.f32 %v1181, 0.01
        %v1252 = vmul.f32 %v1186, 0.01
        %v1253 = vmul.f32 %v1189, 0.01
        %v1254 = vmul.f32 %v1194, 0.01
        %v1255 = vmul.f32 %v1197, 0.01
        %v1256 = vmul.f32 %v1202, 0.01
        %v1257 = vmul.f32 %v1205, 0.01
        %v1258 = vmul.f32 %v1210, 0.01
        %v1259 = vmul.f32 %v1213, 0.01
        %v1260 = vmul.f32 %v1218, 0.01
        %v1261 = vmul.f32 %v1221, 0.01
        %v1262 = vmul.f32 %v1226, 0.01
        %v1263 = vmul.f32 %v1229, 0.01
        %v1264 = vsel %vm1232, %v1170, %v1248
        %v1265 = vsel %vm1233, %v1173, %v1249
        %v1266 = vsel %vm1234, %v1178, %v1250
        %v1267 = vsel %vm1235, %v1181, %v1251
        %v1268 = vsel %vm1236, %v1186, %v1252
        %v1269 = vsel %vm1237, %v1189, %v1253
        %v1270 = vsel %vm1238, %v1194, %v1254
        %v1271 = vsel %vm1239, %v1197, %v1255
        %v1272 = vsel %vm1240, %v1202, %v1256
        %v1273 = vsel %vm1241, %v1205, %v1257
        %v1274 = vsel %vm1242, %v1210, %v1258
        %v1275 = vsel %vm1243, %v1213, %v1259
        %v1276 = vsel %vm1244, %v1218, %v1260
        %v1277 = vsel %vm1245, %v1221, %v1261
        %v1278 = vsel %vm1246, %v1226, %v1262
        %v1279 = vsel %vm1247, %v1229, %v1263
        %v1280 = vpack.c.bf16 %v1265, %v1264
        %v1281 = vpack.c.bf16 %v1267, %v1266
        %v1282 = vpack.c.bf16 %v1269, %v1268
        %v1283 = vpack.c.bf16 %v1271, %v1270
        %v1284 = vpack.c.bf16 %v1273, %v1272
        %v1285 = vpack.c.bf16 %v1275, %v1274
        %v1286 = vpack.c.bf16 %v1277, %v1276
        %v1287 = vpack.c.bf16 %v1279, %v1278
        %v1288 = vld [vmem:[%s8] sm:$0x3]
        %v1289 = vld [vmem:[%s9] sm:$0x1]
        %v1291 = vlaneseq
        %v1292 = vshrl.u32 %v1291, 7
        %v1293 = vsub.s32 0, %v1292
        %v1294 = vrot.slane %v1289, %v1293
        %v1297 = vsel %vm784, %v1280, 0
        %v1300 = vsel %vm784, %v1281, 0
        %v1303 = vsel %vm784, %v1282, 0
        %v1306 = vsel %vm784, %v1283, 0
        %v1309 = vsel %vm784, %v1284, 0
        %v1312 = vsel %vm784, %v1285, 0
        %v1315 = vsel %vm784, %v1286, 0
        %v1318 = vsel %vm784, %v1287, 0
        %v1321 = vsel %vm809, %v1288, 0
        %1323 = vmatprep.subr.bf16.mxu0 0
        %1324 = vmatpush1.bf16.msra.mxu0 %v1321
        %1325 = vmatprep.subr.bf16.mxu0 0
        %1326 = vmatpush1.bf16.msra.mxu0 0
        %1327 = vmatprep.subr.bf16.mxu0 0
        %1328 = vmatpush1.bf16.msra.mxu0 0
        %1329 = vmatprep.subr.bf16.mxu0 0
        %1330 = vmatpush1.bf16.msra.mxu0 0
        %1331 = vmatprep.subr.bf16.mxu0 0
        %1332 = vmatpush1.bf16.msra.mxu0 0
        %1333 = vmatprep.subr.bf16.mxu0 0
        %1334 = vmatpush1.bf16.msra.mxu0 0
        %1335 = vmatprep.subr.bf16.mxu0 0
        %1336 = vmatpush1.bf16.msra.mxu0 0
        %1337 = vmatprep.subr.bf16.mxu0 0
        %1338 = vmatpush1.bf16.msra.mxu0 0
        %1339 = vmatprep.subr.bf16.mxu0 0
        %1340 = vmatpush1.bf16.msra.mxu0 0
        %1341 = vmatprep.subr.bf16.mxu0 0
        %1342 = vmatpush1.bf16.msra.mxu0 0
        %1343 = vmatprep.subr.bf16.mxu0 0
        %1344 = vmatpush1.bf16.msra.mxu0 0
        %1345 = vmatprep.subr.bf16.mxu0 0
        %1346 = vmatpush1.bf16.msra.mxu0 0
        %1347 = vmatprep.subr.bf16.mxu0 0
        %1348 = vmatpush1.bf16.msra.mxu0 0
        %1349 = vmatprep.subr.bf16.mxu0 0
        %1350 = vmatpush1.bf16.msra.mxu0 0
        %1351 = vmatprep.subr.bf16.mxu0 0
        %1352 = vmatpush1.bf16.msra.mxu0 0
        %1353 = vmatprep.subr.bf16.mxu0 0
        %1354 = vmatpush1.bf16.msra.mxu0 0
        %1355 = vmatprep.mubr.bf16.mxu0 0
        %1356 = vmatmul.mubr.bf16.gmra.mrb[0].mxu0 %v1297
        %v1357 = vpop.f32.mrb[0].mxu0
        %v1358 = vadd.f32 %v1294, %v1357
        %v1359 = vpop.f32.mrb[0].mxu0
        %v1360 = vpop.f32.mrb[0].mxu0
        %v1361 = vadd.f32 %v1294, %v1360
        %v1362 = vpop.f32.mrb[0].mxu0
        %1363 = vmatprep.mubr.bf16.mxu0 0
        %1364 = vmatmul.mubr.bf16.gmra.mrb[0].mxu0 %v1300
        %v1365 = vpop.f32.mrb[0].mxu0
        %v1366 = vadd.f32 %v1294, %v1365
        %v1367 = vpop.f32.mrb[0].mxu0
        %v1368 = vpop.f32.mrb[0].mxu0
        %v1369 = vadd.f32 %v1294, %v1368
        %v1370 = vpop.f32.mrb[0].mxu0
        %1371 = vmatprep.mubr.bf16.mxu0 0
        %1372 = vmatmul.mubr.bf16.gmra.mrb[0].mxu0 %v1303
        %v1373 = vpop.f32.mrb[0].mxu0
        %v1374 = vadd.f32 %v1294, %v1373
        %v1375 = vpop.f32.mrb[0].mxu0
        %v1376 = vpop.f32.mrb[0].mxu0
        %v1377 = vadd.f32 %v1294, %v1376
        %v1378 = vpop.f32.mrb[0].mxu0
        %1379 = vmatprep.mubr.bf16.mxu0 0
        %1380 = vmatmul.mubr.bf16.gmra.mrb[0].mxu0 %v1306
        %v1381 = vpop.f32.mrb[0].mxu0
        %v1382 = vadd.f32 %v1294, %v1381
        %v1383 = vpop.f32.mrb[0].mxu0
        %v1384 = vpop.f32.mrb[0].mxu0
        %v1385 = vadd.f32 %v1294, %v1384
        %v1386 = vpop.f32.mrb[0].mxu0
        %1387 = vmatprep.mubr.bf16.mxu0 0
        %1388 = vmatmul.mubr.bf16.gmra.mrb[0].mxu0 %v1309
        %v1389 = vpop.f32.mrb[0].mxu0
        %v1390 = vadd.f32 %v1294, %v1389
        %v1391 = vpop.f32.mrb[0].mxu0
        %v1392 = vpop.f32.mrb[0].mxu0
        %v1393 = vadd.f32 %v1294, %v1392
        %v1394 = vpop.f32.mrb[0].mxu0
        %1395 = vmatprep.mubr.bf16.mxu0 0
        %1396 = vmatmul.mubr.bf16.gmra.mrb[0].mxu0 %v1312
        %v1397 = vpop.f32.mrb[0].mxu0
        %v1398 = vadd.f32 %v1294, %v1397
        %v1399 = vpop.f32.mrb[0].mxu0
        %v1400 = vpop.f32.mrb[0].mxu0
        %v1401 = vadd.f32 %v1294, %v1400
        %v1402 = vpop.f32.mrb[0].mxu0
        %1403 = vmatprep.mubr.bf16.mxu0 0
        %1404 = vmatmul.mubr.bf16.gmra.mrb[0].mxu0 %v1315
        %v1405 = vpop.f32.mrb[0].mxu0
        %v1406 = vadd.f32 %v1294, %v1405
        %v1407 = vpop.f32.mrb[0].mxu0
        %v1408 = vpop.f32.mrb[0].mxu0
        %v1409 = vadd.f32 %v1294, %v1408
        %v1410 = vpop.f32.mrb[0].mxu0
        %1411 = vmatprep.mubr.bf16.mxu0 0
        %1412 = vmatmul.mubr.bf16.gmra.mrb[0].mxu0 %v1318
        %v1413 = vpop.f32.mrb[0].mxu0
        %v1414 = vadd.f32 %v1294, %v1413
        %v1415 = vpop.f32.mrb[0].mxu0
        %v1416 = vpop.f32.mrb[0].mxu0
        %v1417 = vadd.f32 %v1294, %v1416
        %v1418 = vpop.f32.mrb[0].mxu0
        %1419 = vdwg.mxu0
        %vm1420 = vcmp.gt.f32.partialorder %v1358, 0.0
        %vm1421 = vcmp.gt.f32.partialorder %v1361, 0.0
        %vm1422 = vcmp.gt.f32.partialorder %v1366, 0.0
        %vm1423 = vcmp.gt.f32.partialorder %v1369, 0.0
        %vm1424 = vcmp.gt.f32.partialorder %v1374, 0.0
        %vm1425 = vcmp.gt.f32.partialorder %v1377, 0.0
        %vm1426 = vcmp.gt.f32.partialorder %v1382, 0.0
        %vm1427 = vcmp.gt.f32.partialorder %v1385, 0.0
        %vm1428 = vcmp.gt.f32.partialorder %v1390, 0.0
        %vm1429 = vcmp.gt.f32.partialorder %v1393, 0.0
        %vm1430 = vcmp.gt.f32.partialorder %v1398, 0.0
        %vm1431 = vcmp.gt.f32.partialorder %v1401, 0.0
        %vm1432 = vcmp.gt.f32.partialorder %v1406, 0.0
        %vm1433 = vcmp.gt.f32.partialorder %v1409, 0.0
        %vm1434 = vcmp.gt.f32.partialorder %v1414, 0.0
        %vm1435 = vcmp.gt.f32.partialorder %v1417, 0.0
        %v1436 = vmul.f32 %v1358, 0.01
        %v1437 = vmul.f32 %v1361, 0.01
        %v1438 = vmul.f32 %v1366, 0.01
        %v1439 = vmul.f32 %v1369, 0.01
        %v1440 = vmul.f32 %v1374, 0.01
        %v1441 = vmul.f32 %v1377, 0.01
        %v1442 = vmul.f32 %v1382, 0.01
        %v1443 = vmul.f32 %v1385, 0.01
        %v1444 = vmul.f32 %v1390, 0.01
        %v1445 = vmul.f32 %v1393, 0.01
        %v1446 = vmul.f32 %v1398, 0.01
        %v1447 = vmul.f32 %v1401, 0.01
        %v1448 = vmul.f32 %v1406, 0.01
        %v1449 = vmul.f32 %v1409, 0.01
        %v1450 = vmul.f32 %v1414, 0.01
        %v1451 = vmul.f32 %v1417, 0.01
        %v1452 = vsel %vm1420, %v1358, %v1436
        %v1453 = vsel %vm1421, %v1361, %v1437
        %v1454 = vsel %vm1422, %v1366, %v1438
        %v1455 = vsel %vm1423, %v1369, %v1439
        %v1456 = vsel %vm1424, %v1374, %v1440
        %v1457 = vsel %vm1425, %v1377, %v1441
        %v1458 = vsel %vm1426, %v1382, %v1442
        %v1459 = vsel %vm1427, %v1385, %v1443
        %v1460 = vsel %vm1428, %v1390, %v1444
        %v1461 = vsel %vm1429, %v1393, %v1445
        %v1462 = vsel %vm1430, %v1398, %v1446
        %v1463 = vsel %vm1431, %v1401, %v1447
        %v1464 = vsel %vm1432, %v1406, %v1448
        %v1465 = vsel %vm1433, %v1409, %v1449
        %v1466 = vsel %vm1434, %v1414, %v1450
        %v1467 = vsel %vm1435, %v1417, %v1451
        %v1468 = vmax.f32 %v1452, 0.0
        %v1469 = vmax.f32 %v1453, 0.0
        %v1470 = vmax.f32 %v1454, 0.0
        %v1471 = vmax.f32 %v1455, 0.0
        %v1472 = vmax.f32 %v1456, 0.0
        %v1473 = vmax.f32 %v1457, 0.0
        %v1474 = vmax.f32 %v1458, 0.0
        %v1475 = vmax.f32 %v1459, 0.0
        %v1476 = vmax.f32 %v1460, 0.0
        %v1477 = vmax.f32 %v1461, 0.0
        %v1478 = vmax.f32 %v1462, 0.0
        %v1479 = vmax.f32 %v1463, 0.0
        %v1480 = vmax.f32 %v1464, 0.0
        %v1481 = vmax.f32 %v1465, 0.0
        %v1482 = vmax.f32 %v1466, 0.0
        %v1483 = vmax.f32 %v1467, 0.0
        %v1484 = vpack.c.bf16 %v1469, %v1468
        %v1485 = vpack.c.bf16 %v1471, %v1470
        %v1486 = vpack.c.bf16 %v1473, %v1472
        %v1487 = vpack.c.bf16 %v1475, %v1474
        %v1488 = vpack.c.bf16 %v1477, %v1476
        %v1489 = vpack.c.bf16 %v1479, %v1478
        %v1490 = vpack.c.bf16 %v1481, %v1480
        %v1491 = vpack.c.bf16 %v1483, %v1482
        %v1492 = vld [vmem:[%s10] sm:$0xf]
        %v1493 = vld [vmem:[%s10 + $0x4] sm:$0xf]
        %v1494 = vld [vmem:[%s10 + $0x8] sm:$0xf]
        %v1495 = vld [vmem:[%s10 + $0xc] sm:$0xf]
        %v1496 = vld [vmem:[%s11] sm:$0x1]
        %v1498 = vlaneseq
        %v1499 = vshrl.u32 %v1498, 7
        %v1500 = vsub.s32 0, %v1499
        %v1501 = vrot.slane %v1496, %v1500
        %v1507 = vunpack.c.l.b16 %v1492
        %v1508 = vunpack.c.l.b16 %v1493
        %v1509 = vunpack.c.l.b16 %v1494
        %v1510 = vunpack.c.l.b16 %v1495
        %v1511 = vpack.c.b16 %v1508, %v1507
        %v1512 = vpack.c.b16 %v1510, %v1509
        %v1516 = vsel %vm1110, %v1484, 0
        %v1519 = vsel %vm1110, %v1485, 0
        %v1522 = vsel %vm1110, %v1486, 0
        %v1525 = vsel %vm1110, %v1487, 0
        %v1528 = vsel %vm1110, %v1488, 0
        %v1531 = vsel %vm1110, %v1489, 0
        %v1534 = vsel %vm1110, %v1490, 0
        %v1537 = vsel %vm1110, %v1491, 0
        %1539 = vmatprep.subr.bf16.mxu0 0
        %1540 = vmatpush1.bf16.msra.mxu0 %v1511
        %1541 = vmatprep.subr.bf16.mxu0 0
        %1542 = vmatpush1.bf16.msra.mxu0 %v1512
        %1543 = vmatprep.subr.bf16.mxu0 0
        %1544 = vmatpush1.bf16.msra.mxu0 0
        %1545 = vmatprep.subr.bf16.mxu0 0
        %1546 = vmatpush1.bf16.msra.mxu0 0
        %1547 = vmatprep.subr.bf16.mxu0 0
        %1548 = vmatpush1.bf16.msra.mxu0 0
        %1549 = vmatprep.subr.bf16.mxu0 0
        %1550 = vmatpush1.bf16.msra.mxu0 0
        %1551 = vmatprep.subr.bf16.mxu0 0
        %1552 = vmatpush1.bf16.msra.mxu0 0
        %1553 = vmatprep.subr.bf16.mxu0 0
        %1554 = vmatpush1.bf16.msra.mxu0 0
        %1555 = vmatprep.subr.bf16.mxu0 0
        %1556 = vmatpush1.bf16.msra.mxu0 0
        %1557 = vmatprep.subr.bf16.mxu0 0
        %1558 = vmatpush1.bf16.msra.mxu0 0
        %1559 = vmatprep.subr.bf16.mxu0 0
        %1560 = vmatpush1.bf16.msra.mxu0 0
        %1561 = vmatprep.subr.bf16.mxu0 0
        %1562 = vmatpush1.bf16.msra.mxu0 0
        %1563 = vmatprep.subr.bf16.mxu0 0
        %1564 = vmatpush1.bf16.msra.mxu0 0
        %1565 = vmatprep.subr.bf16.mxu0 0
        %1566 = vmatpush1.bf16.msra.mxu0 0
        %1567 = vmatprep.subr.bf16.mxu0 0
        %1568 = vmatpush1.bf16.msra.mxu0 0
        %1569 = vmatprep.subr.bf16.mxu0 0
        %1570 = vmatpush1.bf16.msra.mxu0 0
        %1571 = vmatprep.mubr.bf16.mxu0 0
        %1572 = vmatmul.mubr.bf16.gmra.mrb[0].mxu0 %v1516
        %v1573 = vpop.f32.mrb[0].mxu0
        %v1574 = vadd.f32 %v1501, %v1573
        %v1575 = vpop.f32.mrb[0].mxu0
        %v1576 = vpop.f32.mrb[0].mxu0
        %v1577 = vadd.f32 %v1501, %v1576
        %v1578 = vpop.f32.mrb[0].mxu0
        %1579 = vmatprep.mubr.bf16.mxu0 0
        %1580 = vmatmul.mubr.bf16.gmra.mrb[0].mxu0 %v1519
        %v1581 = vpop.f32.mrb[0].mxu0
        %v1582 = vadd.f32 %v1501, %v1581
        %v1583 = vpop.f32.mrb[0].mxu0
        %v1584 = vpop.f32.mrb[0].mxu0
        %v1585 = vadd.f32 %v1501, %v1584
        %v1586 = vpop.f32.mrb[0].mxu0
        %1587 = vmatprep.mubr.bf16.mxu0 0
        %1588 = vmatmul.mubr.bf16.gmra.mrb[0].mxu0 %v1522
        %v1589 = vpop.f32.mrb[0].mxu0
        %v1590 = vadd.f32 %v1501, %v1589
        %v1591 = vpop.f32.mrb[0].mxu0
        %v1592 = vpop.f32.mrb[0].mxu0
        %v1593 = vadd.f32 %v1501, %v1592
        %v1594 = vpop.f32.mrb[0].mxu0
        %1595 = vmatprep.mubr.bf16.mxu0 0
        %1596 = vmatmul.mubr.bf16.gmra.mrb[0].mxu0 %v1525
        %v1597 = vpop.f32.mrb[0].mxu0
        %v1598 = vadd.f32 %v1501, %v1597
        %v1599 = vpop.f32.mrb[0].mxu0
        %v1600 = vpop.f32.mrb[0].mxu0
        %v1601 = vadd.f32 %v1501, %v1600
        %v1602 = vpop.f32.mrb[0].mxu0
        %1603 = vmatprep.mubr.bf16.mxu0 0
        %1604 = vmatmul.mubr.bf16.gmra.mrb[0].mxu0 %v1528
        %v1605 = vpop.f32.mrb[0].mxu0
        %v1606 = vadd.f32 %v1501, %v1605
        %v1607 = vpop.f32.mrb[0].mxu0
        %v1608 = vpop.f32.mrb[0].mxu0
        %v1609 = vadd.f32 %v1501, %v1608
        %v1610 = vpop.f32.mrb[0].mxu0
        %1611 = vmatprep.mubr.bf16.mxu0 0
        %1612 = vmatmul.mubr.bf16.gmra.mrb[0].mxu0 %v1531
        %v1613 = vpop.f32.mrb[0].mxu0
        %v1614 = vadd.f32 %v1501, %v1613
        %v1615 = vpop.f32.mrb[0].mxu0
        %v1616 = vpop.f32.mrb[0].mxu0
        %v1617 = vadd.f32 %v1501, %v1616
        %v1618 = vpop.f32.mrb[0].mxu0
        %1619 = vmatprep.mubr.bf16.mxu0 0
        %1620 = vmatmul.mubr.bf16.gmra.mrb[0].mxu0 %v1534
        %v1621 = vpop.f32.mrb[0].mxu0
        %v1622 = vadd.f32 %v1501, %v1621
        %v1623 = vpop.f32.mrb[0].mxu0
        %v1624 = vpop.f32.mrb[0].mxu0
        %v1625 = vadd.f32 %v1501, %v1624
        %v1626 = vpop.f32.mrb[0].mxu0
        %1627 = vmatprep.mubr.bf16.mxu0 0
        %1628 = vmatmul.mubr.bf16.gmra.mrb[0].mxu0 %v1537
        %v1629 = vpop.f32.mrb[0].mxu0
        %v1630 = vadd.f32 %v1501, %v1629
        %v1631 = vpop.f32.mrb[0].mxu0
        %v1632 = vpop.f32.mrb[0].mxu0
        %v1633 = vadd.f32 %v1501, %v1632
        %v1634 = vpop.f32.mrb[0].mxu0
        %1635 = vdwg.mxu0
        %v1636 = vld [vmem:[%s3] sm:$0xf]
        %v1637 = vld [vmem:[%s3 + $0x4] sm:$0xf]
        %v1638 = vld [vmem:[%s3 + $0x8] sm:$0xf]
        %v1639 = vld [vmem:[%s3 + $0xc] sm:$0xf]
        %v1640 = vld [vmem:[%s3 + $0x10] sm:$0xf]
        %v1641 = vld [vmem:[%s3 + $0x14] sm:$0xf]
        %v1642 = vld [vmem:[%s3 + $0x18] sm:$0xf]
        %v1643 = vld [vmem:[%s3 + $0x1c] sm:$0xf]
        %v1644 = vld [vmem:[%s3 + $0x20] sm:$0xf]
        %v1645 = vld [vmem:[%s3 + $0x24] sm:$0xf]
        %v1646 = vld [vmem:[%s3 + $0x28] sm:$0xf]
        %v1647 = vld [vmem:[%s3 + $0x2c] sm:$0xf]
        %v1648 = vld [vmem:[%s3 + $0x30] sm:$0xf]
        %v1649 = vld [vmem:[%s3 + $0x34] sm:$0xf]
        %v1650 = vld [vmem:[%s3 + $0x38] sm:$0xf]
        %v1651 = vld [vmem:[%s3 + $0x3c] sm:$0xf]
        %v1652 = vpack.c.bf16 %v1577, %v1574
        %v1653 = vpack.c.bf16 %v1585, %v1582
        %v1654 = vpack.c.bf16 %v1593, %v1590
        %v1655 = vpack.c.bf16 %v1601, %v1598
        %v1656 = vpack.c.bf16 %v1609, %v1606
        %v1657 = vpack.c.bf16 %v1617, %v1614
        %v1658 = vpack.c.bf16 %v1625, %v1622
        %v1659 = vpack.c.bf16 %v1633, %v1630
        %v1676 = vunpack.c.l.b16 %v1636
        %v1677 = vunpack.c.l.b16 %v1637
        %v1678 = vunpack.c.l.b16 %v1638
        %v1679 = vunpack.c.l.b16 %v1639
        %v1680 = vunpack.c.l.b16 %v1640
        %v1681 = vunpack.c.l.b16 %v1641
        %v1682 = vunpack.c.l.b16 %v1642
        %v1683 = vunpack.c.l.b16 %v1643
        %v1684 = vunpack.c.l.b16 %v1644
        %v1685 = vunpack.c.l.b16 %v1645
        %v1686 = vunpack.c.l.b16 %v1646
        %v1687 = vunpack.c.l.b16 %v1647
        %v1688 = vunpack.c.l.b16 %v1648
        %v1689 = vunpack.c.l.b16 %v1649
        %v1690 = vunpack.c.l.b16 %v1650
        %v1691 = vunpack.c.l.b16 %v1651
        %v1692 = vpack.c.b16 %v1677, %v1676
        %v1693 = vpack.c.b16 %v1679, %v1678
        %v1694 = vpack.c.b16 %v1681, %v1680
        %v1695 = vpack.c.b16 %v1683, %v1682
        %v1696 = vpack.c.b16 %v1685, %v1684
        %v1697 = vpack.c.b16 %v1687, %v1686
        %v1698 = vpack.c.b16 %v1689, %v1688
        %v1699 = vpack.c.b16 %v1691, %v1690
        %1708 = vmatprep.subr.bf16.mxu0 0
        %1709 = vmatpush1.bf16.msra.mxu0 %v1652
        %1710 = vmatprep.subr.bf16.mxu0 0
        %1711 = vmatpush1.bf16.msra.mxu0 %v1653
        %1712 = vmatprep.subr.bf16.mxu0 0
        %1713 = vmatpush1.bf16.msra.mxu0 %v1654
        %1714 = vmatprep.subr.bf16.mxu0 0
        %1715 = vmatpush1.bf16.msra.mxu0 %v1655
        %1716 = vmatprep.subr.bf16.mxu0 0
        %1717 = vmatpush1.bf16.msra.mxu0 %v1656
        %1718 = vmatprep.subr.bf16.mxu0 0
        %1719 = vmatpush1.bf16.msra.mxu0 %v1657
        %1720 = vmatprep.subr.bf16.mxu0 0
        %1721 = vmatpush1.bf16.msra.mxu0 %v1658
        %1722 = vmatprep.subr.bf16.mxu0 0
        %1723 = vmatpush1.bf16.msra.mxu0 %v1659
        %1724 = vmatprep.subr.bf16.mxu0 0
        %1725 = vmatpush1.bf16.msra.mxu0 0
        %1726 = vmatprep.subr.bf16.mxu0 0
        %1727 = vmatpush1.bf16.msra.mxu0 0
        %1728 = vmatprep.subr.bf16.mxu0 0
        %1729 = vmatpush1.bf16.msra.mxu0 0
        %1730 = vmatprep.subr.bf16.mxu0 0
        %1731 = vmatpush1.bf16.msra.mxu0 0
        %1732 = vmatprep.subr.bf16.mxu0 0
        %1733 = vmatpush1.bf16.msra.mxu0 0
        %1734 = vmatprep.subr.bf16.mxu0 0
        %1735 = vmatpush1.bf16.msra.mxu0 0
        %1736 = vmatprep.subr.bf16.mxu0 0
        %1737 = vmatpush1.bf16.msra.mxu0 0
        %1738 = vmatprep.subr.bf16.mxu0 0
        %1739 = vmatpush1.bf16.msra.mxu0 0
        %1740 = vmatprep.mubr.bf16.mxu0 0
        %1741 = vmatmul.mubr.bf16.gmra.mrb[0].mxu0 %v1692
        %v1742 = vpop.f32.mrb[0].mxu0
        %v1743 = vadd.f32 0.0, %v1742
        %v1744 = vpop.f32.mrb[0].mxu0
        %v1745 = vpop.f32.mrb[0].mxu0
        %v1746 = vadd.f32 0.0, %v1745
        %v1747 = vpop.f32.mrb[0].mxu0
        %1748 = vmatprep.mubr.bf16.mxu0 0
        %1749 = vmatmul.mubr.bf16.gmra.mrb[0].mxu0 %v1693
        %v1750 = vpop.f32.mrb[0].mxu0
        %v1751 = vadd.f32 0.0, %v1750
        %v1752 = vpop.f32.mrb[0].mxu0
        %v1753 = vpop.f32.mrb[0].mxu0
        %v1754 = vadd.f32 0.0, %v1753
        %v1755 = vpop.f32.mrb[0].mxu0
        %1756 = vmatprep.mubr.bf16.mxu0 0
        %1757 = vmatmul.mubr.bf16.gmra.mrb[0].mxu0 %v1694
        %v1758 = vpop.f32.mrb[0].mxu0
        %v1759 = vadd.f32 0.0, %v1758
        %v1760 = vpop.f32.mrb[0].mxu0
        %v1761 = vpop.f32.mrb[0].mxu0
        %v1762 = vadd.f32 0.0, %v1761
        %v1763 = vpop.f32.mrb[0].mxu0
        %1764 = vmatprep.mubr.bf16.mxu0 0
        %1765 = vmatmul.mubr.bf16.gmra.mrb[0].mxu0 %v1695
        %v1766 = vpop.f32.mrb[0].mxu0
        %v1767 = vadd.f32 0.0, %v1766
        %v1768 = vpop.f32.mrb[0].mxu0
        %v1769 = vpop.f32.mrb[0].mxu0
        %v1770 = vadd.f32 0.0, %v1769
        %v1771 = vpop.f32.mrb[0].mxu0
        %1772 = vmatprep.mubr.bf16.mxu0 0
        %1773 = vmatmul.mubr.bf16.gmra.mrb[0].mxu0 %v1696
        %v1774 = vpop.f32.mrb[0].mxu0
        %v1775 = vadd.f32 0.0, %v1774
        %v1776 = vpop.f32.mrb[0].mxu0
        %v1777 = vpop.f32.mrb[0].mxu0
        %v1778 = vadd.f32 0.0, %v1777
        %v1779 = vpop.f32.mrb[0].mxu0
        %1780 = vmatprep.mubr.bf16.mxu0 0
        %1781 = vmatmul.mubr.bf16.gmra.mrb[0].mxu0 %v1697
        %v1782 = vpop.f32.mrb[0].mxu0
        %v1783 = vadd.f32 0.0, %v1782
        %v1784 = vpop.f32.mrb[0].mxu0
        %v1785 = vpop.f32.mrb[0].mxu0
        %v1786 = vadd.f32 0.0, %v1785
        %v1787 = vpop.f32.mrb[0].mxu0
        %1788 = vmatprep.mubr.bf16.mxu0 0
        %1789 = vmatmul.mubr.bf16.gmra.mrb[0].mxu0 %v1698
        %v1790 = vpop.f32.mrb[0].mxu0
        %v1791 = vadd.f32 0.0, %v1790
        %v1792 = vpop.f32.mrb[0].mxu0
        %v1793 = vpop.f32.mrb[0].mxu0
        %v1794 = vadd.f32 0.0, %v1793
        %v1795 = vpop.f32.mrb[0].mxu0
        %1796 = vmatprep.mubr.bf16.mxu0 0
        %1797 = vmatmul.mubr.bf16.gmra.mrb[0].mxu0 %v1699
        %v1798 = vpop.f32.mrb[0].mxu0
        %v1799 = vadd.f32 0.0, %v1798
        %v1800 = vpop.f32.mrb[0].mxu0
        %v1801 = vpop.f32.mrb[0].mxu0
        %v1802 = vadd.f32 0.0, %v1801
        %v1803 = vpop.f32.mrb[0].mxu0
        %1804 = vdwg.mxu0
        %v1805 = vpack.c.bf16 %v1746, %v1743
        %v1806 = vpack.c.bf16 %v1754, %v1751
        %v1807 = vpack.c.bf16 %v1762, %v1759
        %v1808 = vpack.c.bf16 %v1770, %v1767
        %v1809 = vpack.c.bf16 %v1778, %v1775
        %v1810 = vpack.c.bf16 %v1786, %v1783
        %v1811 = vpack.c.bf16 %v1794, %v1791
        %v1812 = vpack.c.bf16 %v1802, %v1799
        %v1813 = vld [vmem:[%s12] sm:$0xf]
        %v1814 = vld [vmem:[%s12 + $0x4] sm:$0xf]
        %v1815 = vld [vmem:[%s12 + $0x8] sm:$0xf]
        %v1816 = vld [vmem:[%s12 + $0xc] sm:$0xf]
        %v1817 = vld [vmem:[%s12 + $0x10] sm:$0xf]
        %v1818 = vld [vmem:[%s12 + $0x14] sm:$0xf]
        %v1819 = vld [vmem:[%s12 + $0x18] sm:$0xf]
        %v1820 = vld [vmem:[%s12 + $0x1c] sm:$0xf]
        %v1821 = vld [vmem:[%s13] sm:$0x1]
        %v1823 = vlaneseq
        %v1824 = vshrl.u32 %v1823, 7
        %v1825 = vsub.s32 0, %v1824
        %v1826 = vrot.slane %v1821, %v1825
        %v1836 = vunpack.c.l.b16 %v1813
        %v1837 = vunpack.c.l.b16 %v1814
        %v1838 = vunpack.c.l.b16 %v1815
        %v1839 = vunpack.c.l.b16 %v1816
        %v1840 = vunpack.c.l.b16 %v1817
        %v1841 = vunpack.c.l.b16 %v1818
        %v1842 = vunpack.c.l.b16 %v1819
        %v1843 = vunpack.c.l.b16 %v1820
        %v1844 = vpack.c.b16 %v1837, %v1836
        %v1845 = vpack.c.b16 %v1839, %v1838
        %v1846 = vpack.c.b16 %v1841, %v1840
        %v1847 = vpack.c.b16 %v1843, %v1842
        %vm1852 = vcmask 523264
        %v1854 = vsel %vm1852, %v1805, 0
        %v1857 = vsel %vm1852, %v1806, 0
        %v1860 = vsel %vm1852, %v1807, 0
        %v1863 = vsel %vm1852, %v1808, 0
        %v1866 = vsel %vm1852, %v1809, 0
        %v1869 = vsel %vm1852, %v1810, 0
        %v1872 = vsel %vm1852, %v1811, 0
        %v1875 = vsel %vm1852, %v1812, 0
        %1877 = vmatprep.subr.bf16.mxu0 0
        %1878 = vmatpush1.bf16.msra.mxu0 %v1844
        %1879 = vmatprep.subr.bf16.mxu0 0
        %1880 = vmatpush1.bf16.msra.mxu0 %v1845
        %1881 = vmatprep.subr.bf16.mxu0 0
        %1882 = vmatpush1.bf16.msra.mxu0 %v1846
        %1883 = vmatprep.subr.bf16.mxu0 0
        %1884 = vmatpush1.bf16.msra.mxu0 %v1847
        %1885 = vmatprep.subr.bf16.mxu0 0
        %1886 = vmatpush1.bf16.msra.mxu0 0
        %1887 = vmatprep.subr.bf16.mxu0 0
        %1888 = vmatpush1.bf16.msra.mxu0 0
        %1889 = vmatprep.subr.bf16.mxu0 0
        %1890 = vmatpush1.bf16.msra.mxu0 0
        %1891 = vmatprep.subr.bf16.mxu0 0
        %1892 = vmatpush1.bf16.msra.mxu0 0
        %1893 = vmatprep.subr.bf16.mxu0 0
        %1894 = vmatpush1.bf16.msra.mxu0 0
        %1895 = vmatprep.subr.bf16.mxu0 0
        %1896 = vmatpush1.bf16.msra.mxu0 0
        %1897 = vmatprep.subr.bf16.mxu0 0
        %1898 = vmatpush1.bf16.msra.mxu0 0
        %1899 = vmatprep.subr.bf16.mxu0 0
        %1900 = vmatpush1.bf16.msra.mxu0 0
        %1901 = vmatprep.subr.bf16.mxu0 0
        %1902 = vmatpush1.bf16.msra.mxu0 0
        %1903 = vmatprep.subr.bf16.mxu0 0
        %1904 = vmatpush1.bf16.msra.mxu0 0
        %1905 = vmatprep.subr.bf16.mxu0 0
        %1906 = vmatpush1.bf16.msra.mxu0 0
        %1907 = vmatprep.subr.bf16.mxu0 0
        %1908 = vmatpush1.bf16.msra.mxu0 0
        %1909 = vmatprep.mubr.bf16.mxu0 0
        %1910 = vmatmul.mubr.bf16.gmra.mrb[0].mxu0 %v1854
        %v1911 = vpop.f32.mrb[0].mxu0
        %v1912 = vadd.f32 %v1826, %v1911
        %v1913 = vpop.f32.mrb[0].mxu0
        %v1914 = vpop.f32.mrb[0].mxu0
        %v1915 = vadd.f32 %v1826, %v1914
        %v1916 = vpop.f32.mrb[0].mxu0
        %1917 = vmatprep.mubr.bf16.mxu0 0
        %1918 = vmatmul.mubr.bf16.gmra.mrb[0].mxu0 %v1857
        %v1919 = vpop.f32.mrb[0].mxu0
        %v1920 = vadd.f32 %v1826, %v1919
        %v1921 = vpop.f32.mrb[0].mxu0
        %v1922 = vpop.f32.mrb[0].mxu0
        %v1923 = vadd.f32 %v1826, %v1922
        %v1924 = vpop.f32.mrb[0].mxu0
        %1925 = vmatprep.mubr.bf16.mxu0 0
        %1926 = vmatmul.mubr.bf16.gmra.mrb[0].mxu0 %v1860
        %v1927 = vpop.f32.mrb[0].mxu0
        %v1928 = vadd.f32 %v1826, %v1927
        %v1929 = vpop.f32.mrb[0].mxu0
        %v1930 = vpop.f32.mrb[0].mxu0
        %v1931 = vadd.f32 %v1826, %v1930
        %v1932 = vpop.f32.mrb[0].mxu0
        %1933 = vmatprep.mubr.bf16.mxu0 0
        %1934 = vmatmul.mubr.bf16.gmra.mrb[0].mxu0 %v1863
        %v1935 = vpop.f32.mrb[0].mxu0
        %v1936 = vadd.f32 %v1826, %v1935
        %v1937 = vpop.f32.mrb[0].mxu0
        %v1938 = vpop.f32.mrb[0].mxu0
        %v1939 = vadd.f32 %v1826, %v1938
        %v1940 = vpop.f32.mrb[0].mxu0
        %1941 = vmatprep.mubr.bf16.mxu0 0
        %1942 = vmatmul.mubr.bf16.gmra.mrb[0].mxu0 %v1866
        %v1943 = vpop.f32.mrb[0].mxu0
        %v1944 = vadd.f32 %v1826, %v1943
        %v1945 = vpop.f32.mrb[0].mxu0
        %v1946 = vpop.f32.mrb[0].mxu0
        %v1947 = vadd.f32 %v1826, %v1946
        %v1948 = vpop.f32.mrb[0].mxu0
        %1949 = vmatprep.mubr.bf16.mxu0 0
        %1950 = vmatmul.mubr.bf16.gmra.mrb[0].mxu0 %v1869
        %v1951 = vpop.f32.mrb[0].mxu0
        %v1952 = vadd.f32 %v1826, %v1951
        %v1953 = vpop.f32.mrb[0].mxu0
        %v1954 = vpop.f32.mrb[0].mxu0
        %v1955 = vadd.f32 %v1826, %v1954
        %v1956 = vpop.f32.mrb[0].mxu0
        %1957 = vmatprep.mubr.bf16.mxu0 0
        %1958 = vmatmul.mubr.bf16.gmra.mrb[0].mxu0 %v1872
        %v1959 = vpop.f32.mrb[0].mxu0
        %v1960 = vadd.f32 %v1826, %v1959
        %v1961 = vpop.f32.mrb[0].mxu0
        %v1962 = vpop.f32.mrb[0].mxu0
        %v1963 = vadd.f32 %v1826, %v1962
        %v1964 = vpop.f32.mrb[0].mxu0
        %1965 = vmatprep.mubr.bf16.mxu0 0
        %1966 = vmatmul.mubr.bf16.gmra.mrb[0].mxu0 %v1875
        %v1967 = vpop.f32.mrb[0].mxu0
        %v1968 = vadd.f32 %v1826, %v1967
        %v1969 = vpop.f32.mrb[0].mxu0
        %v1970 = vpop.f32.mrb[0].mxu0
        %v1971 = vadd.f32 %v1826, %v1970
        %v1972 = vpop.f32.mrb[0].mxu0
        %1973 = vdwg.mxu0
        %vm1974 = vcmp.gt.f32.partialorder %v1912, 0.0
        %vm1975 = vcmp.gt.f32.partialorder %v1915, 0.0
        %vm1976 = vcmp.gt.f32.partialorder %v1920, 0.0
        %vm1977 = vcmp.gt.f32.partialorder %v1923, 0.0
        %vm1978 = vcmp.gt.f32.partialorder %v1928, 0.0
        %vm1979 = vcmp.gt.f32.partialorder %v1931, 0.0
        %vm1980 = vcmp.gt.f32.partialorder %v1936, 0.0
        %vm1981 = vcmp.gt.f32.partialorder %v1939, 0.0
        %vm1982 = vcmp.gt.f32.partialorder %v1944, 0.0
        %vm1983 = vcmp.gt.f32.partialorder %v1947, 0.0
        %vm1984 = vcmp.gt.f32.partialorder %v1952, 0.0
        %vm1985 = vcmp.gt.f32.partialorder %v1955, 0.0
        %vm1986 = vcmp.gt.f32.partialorder %v1960, 0.0
        %vm1987 = vcmp.gt.f32.partialorder %v1963, 0.0
        %vm1988 = vcmp.gt.f32.partialorder %v1968, 0.0
        %vm1989 = vcmp.gt.f32.partialorder %v1971, 0.0
        %v1990 = vmul.f32 %v1912, 0.01
        %v1991 = vmul.f32 %v1915, 0.01
        %v1992 = vmul.f32 %v1920, 0.01
        %v1993 = vmul.f32 %v1923, 0.01
        %v1994 = vmul.f32 %v1928, 0.01
        %v1995 = vmul.f32 %v1931, 0.01
        %v1996 = vmul.f32 %v1936, 0.01
        %v1997 = vmul.f32 %v1939, 0.01
        %v1998 = vmul.f32 %v1944, 0.01
        %v1999 = vmul.f32 %v1947, 0.01
        %v2000 = vmul.f32 %v1952, 0.01
        %v2001 = vmul.f32 %v1955, 0.01
        %v2002 = vmul.f32 %v1960, 0.01
        %v2003 = vmul.f32 %v1963, 0.01
        %v2004 = vmul.f32 %v1968, 0.01
        %v2005 = vmul.f32 %v1971, 0.01
        %v2006 = vsel %vm1974, %v1912, %v1990
        %v2007 = vsel %vm1975, %v1915, %v1991
        %v2008 = vsel %vm1976, %v1920, %v1992
        %v2009 = vsel %vm1977, %v1923, %v1993
        %v2010 = vsel %vm1978, %v1928, %v1994
        %v2011 = vsel %vm1979, %v1931, %v1995
        %v2012 = vsel %vm1980, %v1936, %v1996
        %v2013 = vsel %vm1981, %v1939, %v1997
        %v2014 = vsel %vm1982, %v1944, %v1998
        %v2015 = vsel %vm1983, %v1947, %v1999
        %v2016 = vsel %vm1984, %v1952, %v2000
        %v2017 = vsel %vm1985, %v1955, %v2001
        %v2018 = vsel %vm1986, %v1960, %v2002
        %v2019 = vsel %vm1987, %v1963, %v2003
        %v2020 = vsel %vm1988, %v1968, %v2004
        %v2021 = vsel %vm1989, %v1971, %v2005
        %v2022 = vpack.c.bf16 %v2007, %v2006
        %v2023 = vpack.c.bf16 %v2009, %v2008
        %v2024 = vpack.c.bf16 %v2011, %v2010
        %v2025 = vpack.c.bf16 %v2013, %v2012
        %v2026 = vpack.c.bf16 %v2015, %v2014
        %v2027 = vpack.c.bf16 %v2017, %v2016
        %v2028 = vpack.c.bf16 %v2019, %v2018
        %v2029 = vpack.c.bf16 %v2021, %v2020
        %v2030 = vld [vmem:[%s14] sm:$0xf]
        %v2031 = vld [vmem:[%s14 + $0x4] sm:$0xf]
        %v2032 = vld [vmem:[%s14 + $0x8] sm:$0xf]
        %v2033 = vld [vmem:[%s14 + $0xc] sm:$0xf]
        %v2034 = vld [vmem:[%s15] sm:$0x1]
        %v2036 = vlaneseq
        %v2037 = vshrl.u32 %v2036, 7
        %v2038 = vsub.s32 0, %v2037
        %v2039 = vrot.slane %v2034, %v2038
        %v2045 = vunpack.c.l.b16 %v2030
        %v2046 = vunpack.c.l.b16 %v2031
        %v2047 = vunpack.c.l.b16 %v2032
        %v2048 = vunpack.c.l.b16 %v2033
        %v2049 = vpack.c.b16 %v2046, %v2045
        %v2050 = vpack.c.b16 %v2048, %v2047
        %v2054 = vsel %vm1110, %v2022, 0
        %v2057 = vsel %vm1110, %v2023, 0
        %v2060 = vsel %vm1110, %v2024, 0
        %v2063 = vsel %vm1110, %v2025, 0
        %v2066 = vsel %vm1110, %v2026, 0
        %v2069 = vsel %vm1110, %v2027, 0
        %v2072 = vsel %vm1110, %v2028, 0
        %v2075 = vsel %vm1110, %v2029, 0
        %2077 = vmatprep.subr.bf16.mxu0 0
        %2078 = vmatpush1.bf16.msra.mxu0 %v2049
        %2079 = vmatprep.subr.bf16.mxu0 0
        %2080 = vmatpush1.bf16.msra.mxu0 %v2050
        %2081 = vmatprep.subr.bf16.mxu0 0
        %2082 = vmatpush1.bf16.msra.mxu0 0
        %2083 = vmatprep.subr.bf16.mxu0 0
        %2084 = vmatpush1.bf16.msra.mxu0 0
        %2085 = vmatprep.subr.bf16.mxu0 0
        %2086 = vmatpush1.bf16.msra.mxu0 0
        %2087 = vmatprep.subr.bf16.mxu0 0
        %2088 = vmatpush1.bf16.msra.mxu0 0
        %2089 = vmatprep.subr.bf16.mxu0 0
        %2090 = vmatpush1.bf16.msra.mxu0 0
        %2091 = vmatprep.subr.bf16.mxu0 0
        %2092 = vmatpush1.bf16.msra.mxu0 0
        %2093 = vmatprep.subr.bf16.mxu0 0
        %2094 = vmatpush1.bf16.msra.mxu0 0
        %2095 = vmatprep.subr.bf16.mxu0 0
        %2096 = vmatpush1.bf16.msra.mxu0 0
        %2097 = vmatprep.subr.bf16.mxu0 0
        %2098 = vmatpush1.bf16.msra.mxu0 0
        %2099 = vmatprep.subr.bf16.mxu0 0
        %2100 = vmatpush1.bf16.msra.mxu0 0
        %2101 = vmatprep.subr.bf16.mxu0 0
        %2102 = vmatpush1.bf16.msra.mxu0 0
        %2103 = vmatprep.subr.bf16.mxu0 0
        %2104 = vmatpush1.bf16.msra.mxu0 0
        %2105 = vmatprep.subr.bf16.mxu0 0
        %2106 = vmatpush1.bf16.msra.mxu0 0
        %2107 = vmatprep.subr.bf16.mxu0 0
        %2108 = vmatpush1.bf16.msra.mxu0 0
        %2109 = vmatprep.mubr.bf16.mxu0 0
        %2110 = vmatmul.mubr.bf16.gmra.mrb[0].mxu0 %v2054
        %v2111 = vpop.f32.mrb[0].mxu0
        %v2112 = vadd.f32 %v2039, %v2111
        %v2113 = vpop.f32.mrb[0].mxu0
        %v2114 = vpop.f32.mrb[0].mxu0
        %v2115 = vadd.f32 %v2039, %v2114
        %v2116 = vpop.f32.mrb[0].mxu0
        %2117 = vmatprep.mubr.bf16.mxu0 0
        %2118 = vmatmul.mubr.bf16.gmra.mrb[0].mxu0 %v2057
        %v2119 = vpop.f32.mrb[0].mxu0
        %v2120 = vadd.f32 %v2039, %v2119
        %v2121 = vpop.f32.mrb[0].mxu0
        %v2122 = vpop.f32.mrb[0].mxu0
        %v2123 = vadd.f32 %v2039, %v2122
        %v2124 = vpop.f32.mrb[0].mxu0
        %2125 = vmatprep.mubr.bf16.mxu0 0
        %2126 = vmatmul.mubr.bf16.gmra.mrb[0].mxu0 %v2060
        %v2127 = vpop.f32.mrb[0].mxu0
        %v2128 = vadd.f32 %v2039, %v2127
        %v2129 = vpop.f32.mrb[0].mxu0
        %v2130 = vpop.f32.mrb[0].mxu0
        %v2131 = vadd.f32 %v2039, %v2130
        %v2132 = vpop.f32.mrb[0].mxu0
        %2133 = vmatprep.mubr.bf16.mxu0 0
        %2134 = vmatmul.mubr.bf16.gmra.mrb[0].mxu0 %v2063
        %v2135 = vpop.f32.mrb[0].mxu0
        %v2136 = vadd.f32 %v2039, %v2135
        %v2137 = vpop.f32.mrb[0].mxu0
        %v2138 = vpop.f32.mrb[0].mxu0
        %v2139 = vadd.f32 %v2039, %v2138
        %v2140 = vpop.f32.mrb[0].mxu0
        %2141 = vmatprep.mubr.bf16.mxu0 0
        %2142 = vmatmul.mubr.bf16.gmra.mrb[0].mxu0 %v2066
        %v2143 = vpop.f32.mrb[0].mxu0
        %v2144 = vadd.f32 %v2039, %v2143
        %v2145 = vpop.f32.mrb[0].mxu0
        %v2146 = vpop.f32.mrb[0].mxu0
        %v2147 = vadd.f32 %v2039, %v2146
        %v2148 = vpop.f32.mrb[0].mxu0
        %2149 = vmatprep.mubr.bf16.mxu0 0
        %2150 = vmatmul.mubr.bf16.gmra.mrb[0].mxu0 %v2069
        %v2151 = vpop.f32.mrb[0].mxu0
        %v2152 = vadd.f32 %v2039, %v2151
        %v2153 = vpop.f32.mrb[0].mxu0
        %v2154 = vpop.f32.mrb[0].mxu0
        %v2155 = vadd.f32 %v2039, %v2154
        %v2156 = vpop.f32.mrb[0].mxu0
        %2157 = vmatprep.mubr.bf16.mxu0 0
        %2158 = vmatmul.mubr.bf16.gmra.mrb[0].mxu0 %v2072
        %v2159 = vpop.f32.mrb[0].mxu0
        %v2160 = vadd.f32 %v2039, %v2159
        %v2161 = vpop.f32.mrb[0].mxu0
        %v2162 = vpop.f32.mrb[0].mxu0
        %v2163 = vadd.f32 %v2039, %v2162
        %v2164 = vpop.f32.mrb[0].mxu0
        %2165 = vmatprep.mubr.bf16.mxu0 0
        %2166 = vmatmul.mubr.bf16.gmra.mrb[0].mxu0 %v2075
        %v2167 = vpop.f32.mrb[0].mxu0
        %v2168 = vadd.f32 %v2039, %v2167
        %v2169 = vpop.f32.mrb[0].mxu0
        %v2170 = vpop.f32.mrb[0].mxu0
        %v2171 = vadd.f32 %v2039, %v2170
        %v2172 = vpop.f32.mrb[0].mxu0
        %2173 = vdwg.mxu0
        %vm2174 = vcmp.gt.f32.partialorder %v2112, 0.0
        %vm2175 = vcmp.gt.f32.partialorder %v2115, 0.0
        %vm2176 = vcmp.gt.f32.partialorder %v2120, 0.0
        %vm2177 = vcmp.gt.f32.partialorder %v2123, 0.0
        %vm2178 = vcmp.gt.f32.partialorder %v2128, 0.0
        %vm2179 = vcmp.gt.f32.partialorder %v2131, 0.0
        %vm2180 = vcmp.gt.f32.partialorder %v2136, 0.0
        %vm2181 = vcmp.gt.f32.partialorder %v2139, 0.0
        %vm2182 = vcmp.gt.f32.partialorder %v2144, 0.0
        %vm2183 = vcmp.gt.f32.partialorder %v2147, 0.0
        %vm2184 = vcmp.gt.f32.partialorder %v2152, 0.0
        %vm2185 = vcmp.gt.f32.partialorder %v2155, 0.0
        %vm2186 = vcmp.gt.f32.partialorder %v2160, 0.0
        %vm2187 = vcmp.gt.f32.partialorder %v2163, 0.0
        %vm2188 = vcmp.gt.f32.partialorder %v2168, 0.0
        %vm2189 = vcmp.gt.f32.partialorder %v2171, 0.0
        %v2190 = vmul.f32 %v2112, 0.01
        %v2191 = vmul.f32 %v2115, 0.01
        %v2192 = vmul.f32 %v2120, 0.01
        %v2193 = vmul.f32 %v2123, 0.01
        %v2194 = vmul.f32 %v2128, 0.01
        %v2195 = vmul.f32 %v2131, 0.01
        %v2196 = vmul.f32 %v2136, 0.01
        %v2197 = vmul.f32 %v2139, 0.01
        %v2198 = vmul.f32 %v2144, 0.01
        %v2199 = vmul.f32 %v2147, 0.01
        %v2200 = vmul.f32 %v2152, 0.01
        %v2201 = vmul.f32 %v2155, 0.01
        %v2202 = vmul.f32 %v2160, 0.01
        %v2203 = vmul.f32 %v2163, 0.01
        %v2204 = vmul.f32 %v2168, 0.01
        %v2205 = vmul.f32 %v2171, 0.01
        %v2206 = vsel %vm2174, %v2112, %v2190
        %v2207 = vsel %vm2175, %v2115, %v2191
        %v2208 = vsel %vm2176, %v2120, %v2192
        %v2209 = vsel %vm2177, %v2123, %v2193
        %v2210 = vsel %vm2178, %v2128, %v2194
        %v2211 = vsel %vm2179, %v2131, %v2195
        %v2212 = vsel %vm2180, %v2136, %v2196
        %v2213 = vsel %vm2181, %v2139, %v2197
        %v2214 = vsel %vm2182, %v2144, %v2198
        %v2215 = vsel %vm2183, %v2147, %v2199
        %v2216 = vsel %vm2184, %v2152, %v2200
        %v2217 = vsel %vm2185, %v2155, %v2201
        %v2218 = vsel %vm2186, %v2160, %v2202
        %v2219 = vsel %vm2187, %v2163, %v2203
        %v2220 = vsel %vm2188, %v2168, %v2204
        %v2221 = vsel %vm2189, %v2171, %v2205
        %2238 = vrot.lane.b32.xlu0 %v1574, 64
        %v2239 = vpop.permute.xlu0 %2238
        %2240 = vrot.lane.b32.xlu0 %v1577, 64
        %v2241 = vpop.permute.xlu0 %2240
        %2242 = vrot.lane.b32.xlu0 %v1582, 64
        %v2243 = vpop.permute.xlu0 %2242
        %2244 = vrot.lane.b32.xlu0 %v1585, 64
        %v2245 = vpop.permute.xlu0 %2244
        %2246 = vrot.lane.b32.xlu0 %v1590, 64
        %v2247 = vpop.permute.xlu0 %2246
        %2248 = vrot.lane.b32.xlu0 %v1593, 64
        %v2249 = vpop.permute.xlu0 %2248
        %2250 = vrot.lane.b32.xlu0 %v1598, 64
        %v2251 = vpop.permute.xlu0 %2250
        %2252 = vrot.lane.b32.xlu0 %v1601, 64
        %v2253 = vpop.permute.xlu0 %2252
        %2254 = vrot.lane.b32.xlu0 %v1606, 64
        %v2255 = vpop.permute.xlu0 %2254
        %2256 = vrot.lane.b32.xlu0 %v1609, 64
        %v2257 = vpop.permute.xlu0 %2256
        %2258 = vrot.lane.b32.xlu0 %v1614, 64
        %v2259 = vpop.permute.xlu0 %2258
        %2260 = vrot.lane.b32.xlu0 %v1617, 64
        %v2261 = vpop.permute.xlu0 %2260
        %2262 = vrot.lane.b32.xlu0 %v1622, 64
        %v2263 = vpop.permute.xlu0 %2262
        %2264 = vrot.lane.b32.xlu0 %v1625, 64
        %v2265 = vpop.permute.xlu0 %2264
        %2266 = vrot.lane.b32.xlu0 %v1630, 64
        %v2267 = vpop.permute.xlu0 %2266
        %2268 = vrot.lane.b32.xlu0 %v1633, 64
        %v2269 = vpop.permute.xlu0 %2268
        %v2286 = vadd.f32 %v2206, %v2239
        %v2287 = vadd.f32 %v2207, %v2241
        %v2288 = vadd.f32 %v2208, %v2243
        %v2289 = vadd.f32 %v2209, %v2245
        %v2290 = vadd.f32 %v2210, %v2247
        %v2291 = vadd.f32 %v2211, %v2249
        %v2292 = vadd.f32 %v2212, %v2251
        %v2293 = vadd.f32 %v2213, %v2253
        %v2294 = vadd.f32 %v2214, %v2255
        %v2295 = vadd.f32 %v2215, %v2257
        %v2296 = vadd.f32 %v2216, %v2259
        %v2297 = vadd.f32 %v2217, %v2261
        %v2298 = vadd.f32 %v2218, %v2263
        %v2299 = vadd.f32 %v2219, %v2265
        %v2300 = vadd.f32 %v2220, %v2267
        %v2301 = vadd.f32 %v2221, %v2269
        %v2302 = vmax.f32 %v2286, 0.0
        %v2303 = vmax.f32 %v2287, 0.0
        %v2304 = vmax.f32 %v2288, 0.0
        %v2305 = vmax.f32 %v2289, 0.0
        %v2306 = vmax.f32 %v2290, 0.0
        %v2307 = vmax.f32 %v2291, 0.0
        %v2308 = vmax.f32 %v2292, 0.0
        %v2309 = vmax.f32 %v2293, 0.0
        %v2310 = vmax.f32 %v2294, 0.0
        %v2311 = vmax.f32 %v2295, 0.0
        %v2312 = vmax.f32 %v2296, 0.0
        %v2313 = vmax.f32 %v2297, 0.0
        %v2314 = vmax.f32 %v2298, 0.0
        %v2315 = vmax.f32 %v2299, 0.0
        %v2316 = vmax.f32 %v2300, 0.0
        %v2317 = vmax.f32 %v2301, 0.0
        %v2318 = vld [vmem:[%s16] sm:$0xff]
        %2319 = vmatprep.subr.mxu0 0.0
        %2320 = vmatpush1.msra.mxu0 %v2302
        %2321 = vmatprep.subr.mxu0 0.0
        %2322 = vmatpush1.msra.mxu0 %v2303
        %2323 = vmatprep.subr.mxu0 0.0
        %2324 = vmatpush1.msra.mxu0 %v2304
        %2325 = vmatprep.subr.mxu0 0.0
        %2326 = vmatpush1.msra.mxu0 %v2305
        %2327 = vmatprep.subr.mxu0 0.0
        %2328 = vmatpush1.msra.mxu0 %v2306
        %2329 = vmatprep.subr.mxu0 0.0
        %2330 = vmatpush1.msra.mxu0 %v2307
        %2331 = vmatprep.subr.mxu0 0.0
        %2332 = vmatpush1.msra.mxu0 %v2308
        %2333 = vmatprep.subr.mxu0 0.0
        %2334 = vmatpush1.msra.mxu0 %v2309
        %2335 = vmatprep.subr.mxu0 0.0
        %2336 = vmatpush1.msra.mxu0 %v2310
        %2337 = vmatprep.subr.mxu0 0.0
        %2338 = vmatpush1.msra.mxu0 %v2311
        %2339 = vmatprep.subr.mxu0 0.0
        %2340 = vmatpush1.msra.mxu0 %v2312
        %2341 = vmatprep.subr.mxu0 0.0
        %2342 = vmatpush1.msra.mxu0 %v2313
        %2343 = vmatprep.subr.mxu0 0.0
        %2344 = vmatpush1.msra.mxu0 %v2314
        %2345 = vmatprep.subr.mxu0 0.0
        %2346 = vmatpush1.msra.mxu0 %v2315
        %2347 = vmatprep.subr.mxu0 0.0
        %2348 = vmatpush1.msra.mxu0 %v2316
        %2349 = vmatprep.subr.mxu0 0.0
        %2350 = vmatpush1.msra.mxu0 %v2317
        %2351 = vmatprep.subr.mxu0 0.0
        %2352 = vmatpush1.msra.mxu0 0.0
        %2353 = vmatprep.subr.mxu0 0.0
        %2354 = vmatpush1.msra.mxu0 0.0
        %2355 = vmatprep.subr.mxu0 0.0
        %2356 = vmatpush1.msra.mxu0 0.0
        %2357 = vmatprep.subr.mxu0 0.0
        %2358 = vmatpush1.msra.mxu0 0.0
        %2359 = vmatprep.subr.mxu0 0.0
        %2360 = vmatpush1.msra.mxu0 0.0
        %2361 = vmatprep.subr.mxu0 0.0
        %2362 = vmatpush1.msra.mxu0 0.0
        %2363 = vmatprep.subr.mxu0 0.0
        %2364 = vmatpush1.msra.mxu0 0.0
        %2365 = vmatprep.subr.mxu0 0.0
        %2366 = vmatpush1.msra.mxu0 0.0
        %2367 = vmatprep.subr.mxu0 0.0
        %2368 = vmatpush1.msra.mxu0 0.0
        %2369 = vmatprep.subr.mxu0 0.0
        %2370 = vmatpush1.msra.mxu0 0.0
        %2371 = vmatprep.subr.mxu0 0.0
        %2372 = vmatpush1.msra.mxu0 0.0
        %2373 = vmatprep.subr.mxu0 0.0
        %2374 = vmatpush1.msra.mxu0 0.0
        %2375 = vmatprep.subr.mxu0 0.0
        %2376 = vmatpush1.msra.mxu0 0.0
        %2377 = vmatprep.subr.mxu0 0.0
        %2378 = vmatpush1.msra.mxu0 0.0
        %2379 = vmatprep.subr.mxu0 0.0
        %2380 = vmatpush1.msra.mxu0 0.0
        %2381 = vmatprep.subr.mxu0 0.0
        %2382 = vmatpush1.msra.mxu0 0.0
        %2383 = vmatprep.mubr.f32.mxu0 0.0
        %2384 = vmatmul.mubr.f32.gmra.mrb[0].mxu0 %v2318
        %v2385 = vpop.f32.mrb[0].mxu0
        %v2386 = vadd.f32 0.0, %v2385
        %v2387 = vpop.f32.mrb[0].mxu0
        %2388 = vdwg.mxu0
        %v2389 = vld [vmem:[%s17] sm:$0xff]
        %v2390 = vld [vmem:[%s17 + $0x8] sm:$0xff]
        %v2391 = vld [vmem:[%s17 + $0x10] sm:$0xff]
        %v2392 = vld [vmem:[%s17 + $0x18] sm:$0xff]
        %v2393 = vld [vmem:[%s17 + $0x20] sm:$0xff]
        %v2394 = vld [vmem:[%s17 + $0x28] sm:$0xff]
        %v2395 = vld [vmem:[%s17 + $0x30] sm:$0xff]
        %v2396 = vld [vmem:[%s17 + $0x38] sm:$0xff]
        %v2397 = vld [vmem:[%s18] sm:$0x1]
        %v2399 = vlaneseq
        %v2400 = vshrl.u32 %v2399, 7
        %v2401 = vsub.s32 0, %v2400
        %v2402 = vrot.slane %v2397, %v2401
        %v2405 = vsel %vm1852, %v2386, 0
        %2407 = vmatprep.subr.mxu0 0.0
        %2408 = vmatpush1.msra.mxu0 %v2389
        %2409 = vmatprep.subr.mxu0 0.0
        %2410 = vmatpush1.msra.mxu0 %v2390
        %2411 = vmatprep.subr.mxu0 0.0
        %2412 = vmatpush1.msra.mxu0 %v2391
        %2413 = vmatprep.subr.mxu0 0.0
        %2414 = vmatpush1.msra.mxu0 %v2392
        %2415 = vmatprep.subr.mxu0 0.0
        %2416 = vmatpush1.msra.mxu0 %v2393
        %2417 = vmatprep.subr.mxu0 0.0
        %2418 = vmatpush1.msra.mxu0 %v2394
        %2419 = vmatprep.subr.mxu0 0.0
        %2420 = vmatpush1.msra.mxu0 %v2395
        %2421 = vmatprep.subr.mxu0 0.0
        %2422 = vmatpush1.msra.mxu0 %v2396
        %2423 = vmatprep.subr.mxu0 0.0
        %2424 = vmatpush1.msra.mxu0 0.0
        %2425 = vmatprep.subr.mxu0 0.0
        %2426 = vmatpush1.msra.mxu0 0.0
        %2427 = vmatprep.subr.mxu0 0.0
        %2428 = vmatpush1.msra.mxu0 0.0
        %2429 = vmatprep.subr.mxu0 0.0
        %2430 = vmatpush1.msra.mxu0 0.0
        %2431 = vmatprep.subr.mxu0 0.0
        %2432 = vmatpush1.msra.mxu0 0.0
        %2433 = vmatprep.subr.mxu0 0.0
        %2434 = vmatpush1.msra.mxu0 0.0
        %2435 = vmatprep.subr.mxu0 0.0
        %2436 = vmatpush1.msra.mxu0 0.0
        %2437 = vmatprep.subr.mxu0 0.0
        %2438 = vmatpush1.msra.mxu0 0.0
        %2439 = vmatprep.subr.mxu0 0.0
        %2440 = vmatpush1.msra.mxu0 0.0
        %2441 = vmatprep.subr.mxu0 0.0
        %2442 = vmatpush1.msra.mxu0 0.0
        %2443 = vmatprep.subr.mxu0 0.0
        %2444 = vmatpush1.msra.mxu0 0.0
        %2445 = vmatprep.subr.mxu0 0.0
        %2446 = vmatpush1.msra.mxu0 0.0
        %2447 = vmatprep.subr.mxu0 0.0
        %2448 = vmatpush1.msra.mxu0 0.0
        %2449 = vmatprep.subr.mxu0 0.0
        %2450 = vmatpush1.msra.mxu0 0.0
        %2451 = vmatprep.subr.mxu0 0.0
        %2452 = vmatpush1.msra.mxu0 0.0
        %2453 = vmatprep.subr.mxu0 0.0
        %2454 = vmatpush1.msra.mxu0 0.0
        %2455 = vmatprep.subr.mxu0 0.0
        %2456 = vmatpush1.msra.mxu0 0.0
        %2457 = vmatprep.subr.mxu0 0.0
        %2458 = vmatpush1.msra.mxu0 0.0
        %2459 = vmatprep.subr.mxu0 0.0
        %2460 = vmatpush1.msra.mxu0 0.0
        %2461 = vmatprep.subr.mxu0 0.0
        %2462 = vmatpush1.msra.mxu0 0.0
        %2463 = vmatprep.subr.mxu0 0.0
        %2464 = vmatpush1.msra.mxu0 0.0
        %2465 = vmatprep.subr.mxu0 0.0
        %2466 = vmatpush1.msra.mxu0 0.0
        %2467 = vmatprep.subr.mxu0 0.0
        %2468 = vmatpush1.msra.mxu0 0.0
        %2469 = vmatprep.subr.mxu0 0.0
        %2470 = vmatpush1.msra.mxu0 0.0
        %2471 = vmatprep.mubr.f32.mxu0 0.0
        %2472 = vmatmul.mubr.f32.gmra.mrb[0].mxu0 %v2405
        %v2473 = vpop.f32.mrb[0].mxu0
        %v2474 = vadd.f32 %v2402, %v2473
        %v2475 = vpop.f32.mrb[0].mxu0
        %2476 = vdwg.mxu0
        %v2477 = vtanh.pop %v2474
        %v2478 = vld [vmem:[%s19] sm:$0xff]
        %v2479 = vld [vmem:[%s19 + $0x8] sm:$0xff]
        %v2480 = vld [vmem:[%s19 + $0x10] sm:$0xff]
        %v2481 = vld [vmem:[%s19 + $0x18] sm:$0xff]
        %v2482 = vld [vmem:[%s19 + $0x20] sm:$0xff]
        %v2483 = vld [vmem:[%s19 + $0x28] sm:$0xff]
        %v2484 = vld [vmem:[%s19 + $0x30] sm:$0xff]
        %v2485 = vld [vmem:[%s19 + $0x38] sm:$0xff]
        %v2486 = vld [vmem:[#allocation2] sm:$0x1]
        %v2488 = vlaneseq
        %v2489 = vshrl.u32 %v2488, 7
        %v2490 = vsub.s32 0, %v2489
        %v2491 = vrot.slane %v2486, %v2490
        %v2494 = vsel %vm1852, %v2477, 0
        %2496 = vmatprep.subr.mxu0 0.0
        %2497 = vmatpush1.msra.mxu0 %v2478
        %2498 = vmatprep.subr.mxu0 0.0
        %2499 = vmatpush1.msra.mxu0 %v2479
        %2500 = vmatprep.subr.mxu0 0.0
        %2501 = vmatpush1.msra.mxu0 %v2480
        %2502 = vmatprep.subr.mxu0 0.0
        %2503 = vmatpush1.msra.mxu0 %v2481
        %2504 = vmatprep.subr.mxu0 0.0
        %2505 = vmatpush1.msra.mxu0 %v2482
        %2506 = vmatprep.subr.mxu0 0.0
        %2507 = vmatpush1.msra.mxu0 %v2483
        %2508 = vmatprep.subr.mxu0 0.0
        %2509 = vmatpush1.msra.mxu0 %v2484
        %2510 = vmatprep.subr.mxu0 0.0
        %2511 = vmatpush1.msra.mxu0 %v2485
        %2512 = vmatprep.subr.mxu0 0.0
        %2513 = vmatpush1.msra.mxu0 0.0
        %2514 = vmatprep.subr.mxu0 0.0
        %2515 = vmatpush1.msra.mxu0 0.0
        %2516 = vmatprep.subr.mxu0 0.0
        %2517 = vmatpush1.msra.mxu0 0.0
        %2518 = vmatprep.subr.mxu0 0.0
        %2519 = vmatpush1.msra.mxu0 0.0
        %2520 = vmatprep.subr.mxu0 0.0
        %2521 = vmatpush1.msra.mxu0 0.0
        %2522 = vmatprep.subr.mxu0 0.0
        %2523 = vmatpush1.msra.mxu0 0.0
        %2524 = vmatprep.subr.mxu0 0.0
        %2525 = vmatpush1.msra.mxu0 0.0
        %2526 = vmatprep.subr.mxu0 0.0
        %2527 = vmatpush1.msra.mxu0 0.0
        %2528 = vmatprep.subr.mxu0 0.0
        %2529 = vmatpush1.msra.mxu0 0.0
        %2530 = vmatprep.subr.mxu0 0.0
        %2531 = vmatpush1.msra.mxu0 0.0
        %2532 = vmatprep.subr.mxu0 0.0
        %2533 = vmatpush1.msra.mxu0 0.0
        %2534 = vmatprep.subr.mxu0 0.0
        %2535 = vmatpush1.msra.mxu0 0.0
        %2536 = vmatprep.subr.mxu0 0.0
        %2537 = vmatpush1.msra.mxu0 0.0
        %2538 = vmatprep.subr.mxu0 0.0
        %2539 = vmatpush1.msra.mxu0 0.0
        %2540 = vmatprep.subr.mxu0 0.0
        %2541 = vmatpush1.msra.mxu0 0.0
        %2542 = vmatprep.subr.mxu0 0.0
        %2543 = vmatpush1.msra.mxu0 0.0
        %2544 = vmatprep.subr.mxu0 0.0
        %2545 = vmatpush1.msra.mxu0 0.0
        %2546 = vmatprep.subr.mxu0 0.0
        %2547 = vmatpush1.msra.mxu0 0.0
        %2548 = vmatprep.subr.mxu0 0.0
        %2549 = vmatpush1.msra.mxu0 0.0
        %2550 = vmatprep.subr.mxu0 0.0
        %2551 = vmatpush1.msra.mxu0 0.0
        %2552 = vmatprep.subr.mxu0 0.0
        %2553 = vmatpush1.msra.mxu0 0.0
        %2554 = vmatprep.subr.mxu0 0.0
        %2555 = vmatpush1.msra.mxu0 0.0
        %2556 = vmatprep.subr.mxu0 0.0
        %2557 = vmatpush1.msra.mxu0 0.0
        %2558 = vmatprep.subr.mxu0 0.0
        %2559 = vmatpush1.msra.mxu0 0.0
        %2560 = vmatprep.mubr.f32.mxu0 0.0
        %2561 = vmatmul.mubr.f32.gmra.mrb[0].mxu0 %v2494
        %v2562 = vpop.f32.mrb[0].mxu0
        %v2563 = vadd.f32 %v2491, %v2562
        %v2564 = vpop.f32.mrb[0].mxu0
        %2565 = vdwg.mxu0
        %vm2566 = vcmask 7168
        %v2567 = vsel %vm2566, %v2563, -inf
        %v2568 = vrot.slane %v2567, 4
        %v2569 = vmax.f32 %v2567, %v2568
        %v2570 = vrot.slane %v2569, 2
        %v2571 = vmax.f32 %v2569, %v2570
        %v2572 = vrot.slane %v2571, 1
        %v2573 = vmax.f32 %v2571, %v2572
        %v2574 = vsub.f32 %v2563, %v2573
        %v2575 = vmul.f32 %v2574, 1.442695
        %v2576 = vpow.pop %v2575
        %v2577 = vsel %vm2566, %v2576, 0.0
        %v2578 = vrot.slane %v2577, 4
        %v2579 = vadd.f32 %v2577, %v2578
        %v2580 = vrot.slane %v2579, 2
        %v2581 = vadd.f32 %v2579, %v2580
        %v2582 = vrot.slane %v2581, 1
        %v2583 = vadd.f32 %v2581, %v2582
        %v2584 = vrcp.pop %v2583
        %v2585 = vmul.f32 %v2576, %v2584
        %2587 = vset.pattern.permute.xlu0 0
        %2588 = vperm.xlu0 %2587, %v2585
        %v2589 = vpop.permute.xlu0 %2588
        %v2591 = vmul.f32 %v2589, %v2386
        %v2592 = vsel %vm1852, %v2591, 0.0
        %v2593 = vrot.slane %v2592, 4
        %v2594 = vadd.f32 %v2592, %v2593
        %v2595 = vrot.slane %v2594, 2
        %v2596 = vadd.f32 %v2594, %v2595
        %v2597 = vrot.slane %v2596, 1
        %v2598 = vadd.f32 %v2596, %v2597
        %v2599 = vld [vmem:[%s21] sm:$0xff]
        %v2600 = vld [vmem:[%s21 + $0x8] sm:$0xff]
        %v2601 = vld [vmem:[%s21 + $0x10] sm:$0xff]
        %v2602 = vld [vmem:[%s21 + $0x18] sm:$0xff]
        %v2603 = vld [vmem:[%s21 + $0x20] sm:$0xff]
        %v2604 = vld [vmem:[%s21 + $0x28] sm:$0xff]
        %v2605 = vld [vmem:[%s21 + $0x30] sm:$0xff]
        %v2606 = vld [vmem:[%s21 + $0x38] sm:$0xff]
        %v2607 = vld [vmem:[%s22] sm:$0x1]
        %v2609 = vsel %vm1852, %v2598, 0
        %2611 = vmatprep.subr.mxu0 0.0
        %2612 = vmatpush1.msra.mxu0 %v2599
        %2613 = vmatprep.subr.mxu0 0.0
        %2614 = vmatpush1.msra.mxu0 %v2600
        %2615 = vmatprep.subr.mxu0 0.0
        %2616 = vmatpush1.msra.mxu0 %v2601
        %2617 = vmatprep.subr.mxu0 0.0
        %2618 = vmatpush1.msra.mxu0 %v2602
        %2619 = vmatprep.subr.mxu0 0.0
        %2620 = vmatpush1.msra.mxu0 %v2603
        %2621 = vmatprep.subr.mxu0 0.0
        %2622 = vmatpush1.msra.mxu0 %v2604
        %2623 = vmatprep.subr.mxu0 0.0
        %2624 = vmatpush1.msra.mxu0 %v2605
        %2625 = vmatprep.subr.mxu0 0.0
        %2626 = vmatpush1.msra.mxu0 %v2606
        %2627 = vmatprep.subr.mxu0 0.0
        %2628 = vmatpush1.msra.mxu0 0.0
        %2629 = vmatprep.subr.mxu0 0.0
        %2630 = vmatpush1.msra.mxu0 0.0
        %2631 = vmatprep.subr.mxu0 0.0
        %2632 = vmatpush1.msra.mxu0 0.0
        %2633 = vmatprep.subr.mxu0 0.0
        %2634 = vmatpush1.msra.mxu0 0.0
        %2635 = vmatprep.subr.mxu0 0.0
        %2636 = vmatpush1.msra.mxu0 0.0
        %2637 = vmatprep.subr.mxu0 0.0
        %2638 = vmatpush1.msra.mxu0 0.0
        %2639 = vmatprep.subr.mxu0 0.0
        %2640 = vmatpush1.msra.mxu0 0.0
        %2641 = vmatprep.subr.mxu0 0.0
        %2642 = vmatpush1.msra.mxu0 0.0
        %2643 = vmatprep.subr.mxu0 0.0
        %2644 = vmatpush1.msra.mxu0 0.0
        %2645 = vmatprep.subr.mxu0 0.0
        %2646 = vmatpush1.msra.mxu0 0.0
        %2647 = vmatprep.subr.mxu0 0.0
        %2648 = vmatpush1.msra.mxu0 0.0
        %2649 = vmatprep.subr.mxu0 0.0
        %2650 = vmatpush1.msra.mxu0 0.0
        %2651 = vmatprep.subr.mxu0 0.0
        %2652 = vmatpush1.msra.mxu0 0.0
        %2653 = vmatprep.subr.mxu0 0.0
        %2654 = vmatpush1.msra.mxu0 0.0
        %2655 = vmatprep.subr.mxu0 0.0
        %2656 = vmatpush1.msra.mxu0 0.0
        %2657 = vmatprep.subr.mxu0 0.0
        %2658 = vmatpush1.msra.mxu0 0.0
        %2659 = vmatprep.subr.mxu0 0.0
        %2660 = vmatpush1.msra.mxu0 0.0
        %2661 = vmatprep.subr.mxu0 0.0
        %2662 = vmatpush1.msra.mxu0 0.0
        %2663 = vmatprep.subr.mxu0 0.0
        %2664 = vmatpush1.msra.mxu0 0.0
        %2665 = vmatprep.subr.mxu0 0.0
        %2666 = vmatpush1.msra.mxu0 0.0
        %2667 = vmatprep.subr.mxu0 0.0
        %2668 = vmatpush1.msra.mxu0 0.0
        %2669 = vmatprep.subr.mxu0 0.0
        %2670 = vmatpush1.msra.mxu0 0.0
        %2671 = vmatprep.subr.mxu0 0.0
        %2672 = vmatpush1.msra.mxu0 0.0
        %2673 = vmatprep.subr.mxu0 0.0
        %2674 = vmatpush1.msra.mxu0 0.0
        %2675 = vmatprep.mubr.f32.mxu0 0.0
        %2676 = vmatmul.mubr.f32.gmra.mrb[0].mxu0 %v2609
        %v2677 = vpop.f32.mrb[0].mxu0
        %v2678 = vadd.f32 %v2607, %v2677
        %v2679 = vpop.f32.mrb[0].mxu0
        %2680 = vdwg.mxu0
        %2681 = vst [vmem:[%s704] sm:$0x1] %v2678
        %s2682 = sand.u32 %s535, 1
        %s2683 = scalar_lea.sflag [#allocation4], %s2682
        %s2684 = sand.u32 %s535, 1
        %s2685 = scalar_lea.vmem [#allocation3], %s2684
        // Predicated region
        $region113: #{sagcn_forward.1} parent=111 // pred_check
          %p2686 = pneg %p545
        $region114: #{sagcn_forward.1} parent=111 // pred_check_branch
          %2688 = sbr.rel (%p2686) target = $region116
        $region115: #{sagcn_forward.1} parent=111 // pred_region
          %s2690 = ssub.s32 16, 16
          %2691 = vsyncadd %s2683, %s2690
          %s2692 = smul.addr %s39, 16
          %s2693 = scalar_lea.hbm %s23, %s2692
          %s2695 = sshll.u32 %s2685, 4
          %s2696 = int_to_ptr.vmem [resolvable:$true] %s2695
          %2698 = dma.vmem_to_hbm [thread:$0]  %s2696, 16, %s2693, %s2683
        $region116: #{sagcn_forward.1} parent=111 // pred_fallthru
          _
      $region112: #{sagcn_forward.1} parent=5 // pred_fallthru
        _
      %p2699 = scmp.le.s32.totalorder 2, %s34
      // Predicated region
      $region117: #{sagcn_forward.1} parent=5 // pred_check
        %p2700 = pneg %p2699
      $region118: #{sagcn_forward.1} parent=5 // pred_check_branch
        %2702 = sbr.rel (%p2700) target = $region120
      $region119: #{sagcn_forward.1} parent=5 // pred_region
        %s2703 = ssub.s32 %s34, 2
        // Predicated region
        $region121: #{sagcn_forward.1} parent=119 // pred_check
          %p2704 = pneg %p551
        $region122: #{sagcn_forward.1} parent=119 // pred_check_branch
          %2706 = sbr.rel (%p2704) target = $region124
        $region123: #{sagcn_forward.1} parent=119 // pred_region
          %s2707 = sand.u32 %s536, 1
          %s2708 = scalar_lea.sflag [#allocation4], %s2707
          %s2709 = sand.u32 %s536, 1
          %s2710 = scalar_lea.vmem [#allocation3], %s2709
          %2711 = dma.done %s2708, 16
        $region124: #{sagcn_forward.1} parent=119 // pred_fallthru
          _
      $region120: #{sagcn_forward.1} parent=5 // pred_fallthru
        _
    $region6: #{sagcn_forward.1} parent=1 // loop_footer
      %s38 = sadd.s32 1, %s34
    $region7: #{sagcn_forward.1} parent=1 // loop_footer_branch
      %33 = sbr.rel target = $region3
    $region8: #{sagcn_forward.1} parent=1 // loop_exit
      _
    %2712 = vsyncpa [#allocation4], 1
    %s2713 = scalar_lea.sflag [#allocation4], 1
    %2714 = vsyncpa %s2713, 1

</llo_original>
